<compile_context>
chip_gen: v6e
topology: v6e:2x2x1
jax: 0.10.0
libtpu: 0.0.40
codegen_flags: <defaults>
</compile_context>

<pallas_src>
import jax
import jax.numpy as jnp
from jax.experimental import pallas as pl
from jax.experimental.pallas import tpu as pltpu


def ncf_kernel(x_ref, up_ref, w1i_ref, w2_ref, b2_ref, wfr_ref, bf_ref, out_ref):
    """Fused NCF MLP over one tile of items.

    x_ref   : (TILE_N, E)  item-embedding tile (pipelined)
    up_ref  : (1, H0)      user_embedding @ W1_user + b1 (precomputed, resident)
    w1i_ref : (E, H0)      item half of the first-layer weight (resident)
    w2_ref  : (H0, H1), b2_ref : (1, H1)
    wfr_ref : (1, H1)      final-layer weight as a row
    bf_ref  : (1, 1)
    out_ref : (1, TILE_N)  lane-dense sigmoid scores for this tile
    """
    x = x_ref[...]

    # first layer: item part on the MXU, user part + b1 folded in as a row.
    h = jnp.dot(x, w1i_ref[...], preferred_element_type=jnp.float32)
    h = jnp.maximum(h + up_ref[...], 0.0)

    # hidden fc layer + ReLU
    h = jnp.dot(h, w2_ref[...], preferred_element_type=jnp.float32)
    h = jnp.maximum(h + b2_ref[...], 0.0)

    # final layer: contract H1, items land on the lane axis -> (1, TILE_N)
    logits = jnp.einsum(
        "oh,nh->on", wfr_ref[...], h, preferred_element_type=jnp.float32
    ) + bf_ref[...]
    out_ref[...] = jax.nn.sigmoid(logits)


def ncf_forward(user_embedding, item_embeddings, params, *, tile_n=512):
    """Wrapper: split W1, pad items to a tile multiple, call the Pallas kernel.

    user_embedding:  (E,) float32
    item_embeddings: (N, E) float32
    params: w1 (2E,H0), b1 (1,H0), w2 (H0,H1), b2 (1,H1), wf (H1,1), bf (1,1)
            (already in (in, out) layout).
    Returns (N, 1) float32 sigmoid scores.
    """
    assert tile_n % 128 == 0, "tile_n must be a multiple of 128 (lane-dense output)"
    n_items, emb = item_embeddings.shape

    w1, b1 = params["w1"], params["b1"]
    w2, b2 = params["w2"], params["b2"]
    wf, bf = params["wf"], params["bf"]

    # Eliminate the (N, 2E) concat: user half of layer 1 computed once here.
    w1_user, w1_item = w1[:emb], w1[emb:]
    user_part = (
        user_embedding[None, :].astype(jnp.float32) @ w1_user.astype(jnp.float32)
        + b1
    ).astype(jnp.float32)                       # (1, H0)
    wf_row = wf.T.astype(jnp.float32)           # (1, H1)

    items = item_embeddings.astype(jnp.float32)
    n_pad = pl.cdiv(n_items, tile_n) * tile_n
    if n_pad != n_items:
        items = jnp.pad(items, ((0, n_pad - n_items), (0, 0)))
    num_tiles = n_pad // tile_n

    # Resident full blocks for the (tiny) weights: same block every grid step.
    resident = lambda a: pl.BlockSpec(a.shape, lambda i: (0,) * a.ndim)

    out = pl.pallas_call(
        ncf_kernel,
        out_shape=jax.ShapeDtypeStruct((1, n_pad), jnp.float32),
        grid=(num_tiles,),
        in_specs=[
            pl.BlockSpec((tile_n, emb), lambda i: (i, 0)),   # streamed item tile
            resident(user_part),
            resident(w1_item),
            resident(w2),
            resident(b2),
            resident(wf_row),
            resident(bf),
        ],
        out_specs=pl.BlockSpec((1, tile_n), lambda i: (0, i)),
        compiler_params=pltpu.CompilerParams(
            dimension_semantics=("parallel",),
        ),
    )(items, user_part, w1_item, w2, b2, wf_row, bf)

    return out[0, :n_items].reshape(n_items, 1)


def init_params(key, embedding_size, hidden_sizes):
    """Deterministic parameter init (uniform, like torch Linear default range)."""
    def linear(key, fan_in, fan_out):
        kw, kb = jax.random.split(key)
        bound = 1.0 / jnp.sqrt(fan_in)
        w = jax.random.uniform(kw, (fan_in, fan_out), jnp.float32, -bound, bound)
        b = jax.random.uniform(kb, (1, fan_out), jnp.float32, -bound, bound)
        return w, b

    k1, k2, k3 = jax.random.split(key, 3)
    w1, b1 = linear(k1, embedding_size * 2, hidden_sizes[0])
    w2, b2 = linear(k2, hidden_sizes[0], hidden_sizes[1])
    wf, bf = linear(k3, hidden_sizes[1], 1)
    return {"w1": w1, "b1": b1, "w2": w2, "b2": b2, "wf": wf, "bf": bf}


def reference_forward(user_embedding, item_embeddings, params):
    """Pure-JAX reference matching the PyTorch forward (with the concat)."""
    n = item_embeddings.shape[0]
    x = jnp.concatenate(
        [jnp.broadcast_to(user_embedding[None, :], (n, user_embedding.shape[0])),
         item_embeddings], axis=1)
    h = jnp.maximum(x @ params["w1"] + params["b1"], 0.0)
    h = jnp.maximum(h @ params["w2"] + params["b2"], 0.0)
    return jax.nn.sigmoid(h @ params["wf"] + params["bf"])


if __name__ == "__main__":
    embedding_size = 32
    hidden_sizes = [64, 32]
    n_items = 16

    key = jax.random.PRNGKey(0)
    k_params, k_user, k_items = jax.random.split(key, 3)

    params = init_params(k_params, embedding_size, hidden_sizes)
    user_embedding = jax.random.normal(k_user, (embedding_size,), jnp.float32)
    item_embeddings = jax.random.normal(k_items, (n_items, embedding_size), jnp.float32)

    out = ncf_forward(user_embedding, item_embeddings, params)
    out = jax.block_until_ready(out)

    ref = reference_forward(user_embedding, item_embeddings, params)
    assert out.shape == (n_items, 1)
    assert jnp.allclose(out, ref, atol=1e-4, rtol=1e-4), "mismatch vs reference"

    print("KERNEL_OK")
</pallas_src>

<mosaic_0001>
module attributes {stable_mosaic.version = 11 : i64} {
  func.func @ncf_kernel(%arg0: i32, %arg1: memref<512x32xf32, #tpu.memory_space<vmem>>, %arg2: memref<1x64xf32, #tpu.memory_space<vmem>>, %arg3: memref<32x64xf32, #tpu.memory_space<vmem>>, %arg4: memref<64x32xf32, #tpu.memory_space<vmem>>, %arg5: memref<1x32xf32, #tpu.memory_space<vmem>>, %arg6: memref<1x32xf32, #tpu.memory_space<vmem>>, %arg7: memref<1x1xf32, #tpu.memory_space<vmem>>, %arg8: memref<1x512xf32, #tpu.memory_space<vmem>>) attributes {dimension_semantics = [#tpu.dimension_semantics<parallel>], iteration_bounds = array<i64: 1>, scalar_prefetch = 0 : i64, scratch_operands = 0 : i64, tpu.core_type = #tpu.core_type<tc>, window_params = [{transform_indices = @transform_0, window_bounds = array<i64: 512, 32>}, {pipeline_mode = #tpu.pipeline_mode<synchronous>, transform_indices = @transform_1, window_bounds = array<i64: 1, 64>}, {pipeline_mode = #tpu.pipeline_mode<synchronous>, transform_indices = @transform_2, window_bounds = array<i64: 32, 64>}, {pipeline_mode = #tpu.pipeline_mode<synchronous>, transform_indices = @transform_3, window_bounds = array<i64: 64, 32>}, {pipeline_mode = #tpu.pipeline_mode<synchronous>, transform_indices = @transform_4, window_bounds = array<i64: 1, 32>}, {pipeline_mode = #tpu.pipeline_mode<synchronous>, transform_indices = @transform_5, window_bounds = array<i64: 1, 32>}, {pipeline_mode = #tpu.pipeline_mode<synchronous>, transform_indices = @transform_6, window_bounds = array<i64: 1, 1>}, {transform_indices = @transform_7, window_bounds = array<i64: 1, 512>}]} {
    %c0 = arith.constant 0 : index
    %c0_0 = arith.constant 0 : index
    %0 = vector.load %arg1[%c0, %c0_0] : memref<512x32xf32, #tpu.memory_space<vmem>>, vector<512x32xf32>
    %c0_1 = arith.constant 0 : index
    %c0_2 = arith.constant 0 : index
    %1 = vector.load %arg3[%c0_1, %c0_2] : memref<32x64xf32, #tpu.memory_space<vmem>>, vector<32x64xf32>
    %cst = arith.constant dense<0.000000e+00> : vector<512x64xf32>
    %2 = tpu.matmul %0, %1, %cst {dimension_numbers = #tpu.dot_dimension_numbers<[1], [0], [0], [1], [0, 0, 1, 1], [], []>} : vector<512x32xf32>, vector<32x64xf32>, vector<512x64xf32> -> vector<512x64xf32>
    %c0_3 = arith.constant 0 : index
    %c0_4 = arith.constant 0 : index
    %3 = vector.load %arg2[%c0_3, %c0_4] : memref<1x64xf32, #tpu.memory_space<vmem>>, vector<1x64xf32>
    %4 = vector.broadcast %3 : vector<1x64xf32> to vector<512x64xf32>
    %5 = arith.addf %2, %4 : vector<512x64xf32>
    %cst_5 = arith.constant 0.000000e+00 : f32
    %6 = vector.broadcast %cst_5 : f32 to vector<512x64xf32>
    %7 = arith.maximumf %5, %6 : vector<512x64xf32>
    %c0_6 = arith.constant 0 : index
    %c0_7 = arith.constant 0 : index
    %8 = vector.load %arg4[%c0_6, %c0_7] : memref<64x32xf32, #tpu.memory_space<vmem>>, vector<64x32xf32>
    %cst_8 = arith.constant dense<0.000000e+00> : vector<512x32xf32>
    %9 = tpu.matmul %7, %8, %cst_8 {dimension_numbers = #tpu.dot_dimension_numbers<[1], [0], [0], [1], [0, 0, 1, 1], [], []>} : vector<512x64xf32>, vector<64x32xf32>, vector<512x32xf32> -> vector<512x32xf32>
    %c0_9 = arith.constant 0 : index
    %c0_10 = arith.constant 0 : index
    %10 = vector.load %arg5[%c0_9, %c0_10] : memref<1x32xf32, #tpu.memory_space<vmem>>, vector<1x32xf32>
    %11 = vector.broadcast %10 : vector<1x32xf32> to vector<512x32xf32>
    %12 = arith.addf %9, %11 : vector<512x32xf32>
    %cst_11 = arith.constant 0.000000e+00 : f32
    %13 = vector.broadcast %cst_11 : f32 to vector<512x32xf32>
    %14 = arith.maximumf %12, %13 : vector<512x32xf32>
    %c0_12 = arith.constant 0 : index
    %c0_13 = arith.constant 0 : index
    %15 = vector.load %arg6[%c0_12, %c0_13] : memref<1x32xf32, #tpu.memory_space<vmem>>, vector<1x32xf32>
    "tpu.trace_start"() <{level = 10 : i32, message = "oh,nh->on"}> : () -> ()
    %cst_14 = arith.constant dense<0.000000e+00> : vector<1x512xf32>
    %16 = tpu.matmul %15, %14, %cst_14 {dimension_numbers = #tpu.dot_dimension_numbers<[1], [1], [0], [0], [0, 0, 1, 0], [], []>} : vector<1x32xf32>, vector<512x32xf32>, vector<1x512xf32> -> vector<1x512xf32>
    "tpu.trace_stop"() : () -> ()
    %c0_15 = arith.constant 0 : index
    %c0_16 = arith.constant 0 : index
    %17 = vector.load %arg7[%c0_15, %c0_16] : memref<1x1xf32, #tpu.memory_space<vmem>>, vector<1x1xf32>
    %18 = vector.broadcast %17 : vector<1x1xf32> to vector<1x512xf32>
    %19 = arith.addf %16, %18 : vector<1x512xf32>
    %20 = arith.negf %19 : vector<1x512xf32>
    %21 = math.exp %20 : vector<1x512xf32>
    %cst_17 = arith.constant 1.000000e+00 : f32
    %22 = vector.broadcast %cst_17 : f32 to vector<1x512xf32>
    %23 = arith.addf %22, %21 : vector<1x512xf32>
    %24 = arith.divf %22, %23 : vector<1x512xf32>
    %c0_18 = arith.constant 0 : index
    %c0_19 = arith.constant 0 : index
    %25 = vector.load %arg8[%c0_18, %c0_19] : memref<1x512xf32, #tpu.memory_space<vmem>>, vector<1x512xf32>
    tpu.vector_store %arg8[%c0_18, %c0_19], %24 {strides = array<i32>} : memref<1x512xf32, #tpu.memory_space<vmem>>, vector<1x512xf32>,
    return
  }
  func.func @transform_0(%arg0: i32) -> (i32, i32) {
    %c0_i32 = arith.constant 0 : i32
    %c0_i32_0 = arith.constant 0 : i32
    return %arg0, %c0_i32 : i32, i32
  }
  func.func @transform_1(%arg0: i32) -> (i32, i32) {
    %c0_i32 = arith.constant 0 : i32
    %c0_i32_0 = arith.constant 0 : i32
    %c0_i32_1 = arith.constant 0 : i32
    return %c0_i32, %c0_i32_0 : i32, i32
  }
  func.func @transform_2(%arg0: i32) -> (i32, i32) {
    %c0_i32 = arith.constant 0 : i32
    %c0_i32_0 = arith.constant 0 : i32
    %c0_i32_1 = arith.constant 0 : i32
    return %c0_i32, %c0_i32_0 : i32, i32
  }
  func.func @transform_3(%arg0: i32) -> (i32, i32) {
    %c0_i32 = arith.constant 0 : i32
    %c0_i32_0 = arith.constant 0 : i32
    %c0_i32_1 = arith.constant 0 : i32
    return %c0_i32, %c0_i32_0 : i32, i32
  }
  func.func @transform_4(%arg0: i32) -> (i32, i32) {
    %c0_i32 = arith.constant 0 : i32
    %c0_i32_0 = arith.constant 0 : i32
    %c0_i32_1 = arith.constant 0 : i32
    return %c0_i32, %c0_i32_0 : i32, i32
  }
  func.func @transform_5(%arg0: i32) -> (i32, i32) {
    %c0_i32 = arith.constant 0 : i32
    %c0_i32_0 = arith.constant 0 : i32
    %c0_i32_1 = arith.constant 0 : i32
    return %c0_i32, %c0_i32_0 : i32, i32
  }
  func.func @transform_6(%arg0: i32) -> (i32, i32) {
    %c0_i32 = arith.constant 0 : i32
    %c0_i32_0 = arith.constant 0 : i32
    %c0_i32_1 = arith.constant 0 : i32
    return %c0_i32, %c0_i32_0 : i32, i32
  }
  func.func @transform_7(%arg0: i32) -> (i32, i32) {
    %c0_i32 = arith.constant 0 : i32
    %c0_i32_0 = arith.constant 0 : i32
    return %c0_i32, %arg0 : i32, i32
  }
}

</mosaic_0001>

<llo_original>
// kernel: tpu_custom_call.1
$region0: #{tpu_custom_call.1}
  #allocation0 [shape = 'u32[]', space=smem, size = 0x4, offset = 0x4, fixed_abs, tag = 'smem constant byte address 0x4 - core index']
  #allocation1 [shape = 'u32[144,128]{1,0:T(1,128)}', space=vmem, size = 0x12000, scoped, tag = 'internal scratch']
  #allocation2 [shape = 'f32[1,1]{1,0:T(1,128)S(1)}', space=vmem, size = 0x200, scoped, tag = 'scoped memory for tpu_custom_call.1']
  %s0 = inlined_call_operand.vmem [shape: f32[512,32], index: 0, kind: input, shape index: {}]
  %s1 = inlined_call_operand.vmem [shape: f32[1,64], index: 1, kind: input, shape index: {}]
  %s2 = inlined_call_operand.vmem [shape: f32[32,64], index: 2, kind: input, shape index: {}]
  %s3 = inlined_call_operand.vmem [shape: f32[64,32], index: 3, kind: input, shape index: {}]
  %s4 = inlined_call_operand.vmem [shape: f32[1,32], index: 4, kind: input, shape index: {}]
  %s5 = inlined_call_operand.vmem [shape: f32[1,32], index: 5, kind: input, shape index: {}]
  %s6 = inlined_call_operand.<no memory space> [shape: f32[1,1], index: 6, kind: input, shape index: {}]
  %s7 = inlined_call_operand.hbm [shape: f32[1,512], index: 7, kind: output, shape index: {}]
  %s8 = sld [smem:[#allocation0]]
  $region38: #{tpu_custom_call.1} parent=0
    _
  %s10 = ssub.s32 1, %s8
  %s11 = scalar_select 0, %s10, %s8
  %v12 = vstv %s6
  %13 = vst [vmem:[#allocation2] sm:$0x1] %v12
  $region1: #{tpu_custom_call.1} parent=0
    #allocation3 [shape = 'u8[2048]{0}', space=vmem, size = 0x800, scoped, tag = 'output window, operand 0, single buffered']
    #allocation4 [shape = 's32[1]{0}', space=sflag, size = 0x4, scoped, tag = 'scoped memory for tpu_custom_call.1']
    %14 = vsyncpa [#allocation4], 0
    // Predicated region
    $region2: #{tpu_custom_call.1} parent=1 // pred_check
      _
    $region3: #{tpu_custom_call.1} parent=1 // pred_check_branch
      %16 = sbr.rel (0) target = $region5
    $region4: #{tpu_custom_call.1} parent=1 // pred_region
      _
    $region5: #{tpu_custom_call.1} parent=1 // pred_fallthru
      _
    // Predicated region
    $region6: #{tpu_custom_call.1} parent=1 // pred_check
      _
    $region7: #{tpu_custom_call.1} parent=1 // pred_check_branch
      %18 = sbr.rel (0) target = $region9
    $region8: #{tpu_custom_call.1} parent=1 // pred_region
      _
    $region9: #{tpu_custom_call.1} parent=1 // pred_fallthru
      _
    // Predicated region
    $region10: #{tpu_custom_call.1} parent=1 // pred_check
      _
    $region11: #{tpu_custom_call.1} parent=1 // pred_check_branch
      %20 = sbr.rel (0) target = $region13
    $region12: #{tpu_custom_call.1} parent=1 // pred_region
      _
    $region13: #{tpu_custom_call.1} parent=1 // pred_fallthru
      _
    // Predicated region
    $region14: #{tpu_custom_call.1} parent=1 // pred_check
      _
    $region15: #{tpu_custom_call.1} parent=1 // pred_check_branch
      %22 = sbr.rel (0) target = $region17
    $region16: #{tpu_custom_call.1} parent=1 // pred_region
      _
    $region17: #{tpu_custom_call.1} parent=1 // pred_fallthru
      _
    // Predicated region
    $region18: #{tpu_custom_call.1} parent=1 // pred_check
      _
    $region19: #{tpu_custom_call.1} parent=1 // pred_check_branch
      %24 = sbr.rel (0) target = $region21
    $region20: #{tpu_custom_call.1} parent=1 // pred_region
      _
    $region21: #{tpu_custom_call.1} parent=1 // pred_fallthru
      _
    // Predicated region
    $region22: #{tpu_custom_call.1} parent=1 // pred_check
      _
    $region23: #{tpu_custom_call.1} parent=1 // pred_check_branch
      %26 = sbr.rel (0) target = $region25
    $region24: #{tpu_custom_call.1} parent=1 // pred_region
      _
    $region25: #{tpu_custom_call.1} parent=1 // pred_fallthru
      _
    // Predicated region
    $region26: #{tpu_custom_call.1} parent=1 // pred_check
      _
    $region27: #{tpu_custom_call.1} parent=1 // pred_check_branch
      %28 = sbr.rel (0) target = $region29
    $region28: #{tpu_custom_call.1} parent=1 // pred_region
      _
    $region29: #{tpu_custom_call.1} parent=1 // pred_fallthru
      _
    %v29 = vld [vmem:[%s0] sm:$0xff]
    %v30 = vld [vmem:[%s0 + $0x8] sm:$0xff]
    %v31 = vld [vmem:[%s0 + $0x10] sm:$0xff]
    %v32 = vld [vmem:[%s0 + $0x18] sm:$0xff]
    %v33 = vld [vmem:[%s0 + $0x20] sm:$0xff]
    %v34 = vld [vmem:[%s0 + $0x28] sm:$0xff]
    %v35 = vld [vmem:[%s0 + $0x30] sm:$0xff]
    %v36 = vld [vmem:[%s0 + $0x38] sm:$0xff]
    %v37 = vld [vmem:[%s0 + $0x40] sm:$0xff]
    %v38 = vld [vmem:[%s0 + $0x48] sm:$0xff]
    %v39 = vld [vmem:[%s0 + $0x50] sm:$0xff]
    %v40 = vld [vmem:[%s0 + $0x58] sm:$0xff]
    %v41 = vld [vmem:[%s0 + $0x60] sm:$0xff]
    %v42 = vld [vmem:[%s0 + $0x68] sm:$0xff]
    %v43 = vld [vmem:[%s0 + $0x70] sm:$0xff]
    %v44 = vld [vmem:[%s0 + $0x78] sm:$0xff]
    %v45 = vld [vmem:[%s0 + $0x80] sm:$0xff]
    %v46 = vld [vmem:[%s0 + $0x88] sm:$0xff]
    %v47 = vld [vmem:[%s0 + $0x90] sm:$0xff]
    %v48 = vld [vmem:[%s0 + $0x98] sm:$0xff]
    %v49 = vld [vmem:[%s0 + $0xa0] sm:$0xff]
    %v50 = vld [vmem:[%s0 + $0xa8] sm:$0xff]
    %v51 = vld [vmem:[%s0 + $0xb0] sm:$0xff]
    %v52 = vld [vmem:[%s0 + $0xb8] sm:$0xff]
    %v53 = vld [vmem:[%s0 + $0xc0] sm:$0xff]
    %v54 = vld [vmem:[%s0 + $0xc8] sm:$0xff]
    %v55 = vld [vmem:[%s0 + $0xd0] sm:$0xff]
    %v56 = vld [vmem:[%s0 + $0xd8] sm:$0xff]
    %v57 = vld [vmem:[%s0 + $0xe0] sm:$0xff]
    %v58 = vld [vmem:[%s0 + $0xe8] sm:$0xff]
    %v59 = vld [vmem:[%s0 + $0xf0] sm:$0xff]
    %v60 = vld [vmem:[%s0 + $0xf8] sm:$0xff]
    %v61 = vld [vmem:[%s0 + $0x100] sm:$0xff]
    %v62 = vld [vmem:[%s0 + $0x108] sm:$0xff]
    %v63 = vld [vmem:[%s0 + $0x110] sm:$0xff]
    %v64 = vld [vmem:[%s0 + $0x118] sm:$0xff]
    %v65 = vld [vmem:[%s0 + $0x120] sm:$0xff]
    %v66 = vld [vmem:[%s0 + $0x128] sm:$0xff]
    %v67 = vld [vmem:[%s0 + $0x130] sm:$0xff]
    %v68 = vld [vmem:[%s0 + $0x138] sm:$0xff]
    %v69 = vld [vmem:[%s0 + $0x140] sm:$0xff]
    %v70 = vld [vmem:[%s0 + $0x148] sm:$0xff]
    %v71 = vld [vmem:[%s0 + $0x150] sm:$0xff]
    %v72 = vld [vmem:[%s0 + $0x158] sm:$0xff]
    %v73 = vld [vmem:[%s0 + $0x160] sm:$0xff]
    %v74 = vld [vmem:[%s0 + $0x168] sm:$0xff]
    %v75 = vld [vmem:[%s0 + $0x170] sm:$0xff]
    %v76 = vld [vmem:[%s0 + $0x178] sm:$0xff]
    %v77 = vld [vmem:[%s0 + $0x180] sm:$0xff]
    %v78 = vld [vmem:[%s0 + $0x188] sm:$0xff]
    %v79 = vld [vmem:[%s0 + $0x190] sm:$0xff]
    %v80 = vld [vmem:[%s0 + $0x198] sm:$0xff]
    %v81 = vld [vmem:[%s0 + $0x1a0] sm:$0xff]
    %v82 = vld [vmem:[%s0 + $0x1a8] sm:$0xff]
    %v83 = vld [vmem:[%s0 + $0x1b0] sm:$0xff]
    %v84 = vld [vmem:[%s0 + $0x1b8] sm:$0xff]
    %v85 = vld [vmem:[%s0 + $0x1c0] sm:$0xff]
    %v86 = vld [vmem:[%s0 + $0x1c8] sm:$0xff]
    %v87 = vld [vmem:[%s0 + $0x1d0] sm:$0xff]
    %v88 = vld [vmem:[%s0 + $0x1d8] sm:$0xff]
    %v89 = vld [vmem:[%s0 + $0x1e0] sm:$0xff]
    %v90 = vld [vmem:[%s0 + $0x1e8] sm:$0xff]
    %v91 = vld [vmem:[%s0 + $0x1f0] sm:$0xff]
    %v92 = vld [vmem:[%s0 + $0x1f8] sm:$0xff]
    %v93 = vld [vmem:[%s2] sm:$0xff]
    %v94 = vld [vmem:[%s2 + $0x8] sm:$0xff]
    %v95 = vld [vmem:[%s2 + $0x10] sm:$0xff]
    %v96 = vld [vmem:[%s2 + $0x18] sm:$0xff]
    %v97 = vld [vmem:[%s1] sm:$0x1]
    %v99 = vlaneseq
    %v100 = vshrl.u32 %v99, 7
    %v101 = vsub.s32 0, %v100
    %v102 = vrot.slane %v97, %v101
    %vm104 = vcmask 261120
    %v106 = vsel %vm104, %v29, 0
    %v109 = vsel %vm104, %v30, 0
    %v112 = vsel %vm104, %v31, 0
    %v115 = vsel %vm104, %v32, 0
    %v118 = vsel %vm104, %v33, 0
    %v121 = vsel %vm104, %v34, 0
    %v124 = vsel %vm104, %v35, 0
    %v127 = vsel %vm104, %v36, 0
    %v130 = vsel %vm104, %v37, 0
    %v133 = vsel %vm104, %v38, 0
    %v136 = vsel %vm104, %v39, 0
    %v139 = vsel %vm104, %v40, 0
    %v142 = vsel %vm104, %v41, 0
    %v145 = vsel %vm104, %v42, 0
    %v148 = vsel %vm104, %v43, 0
    %v151 = vsel %vm104, %v44, 0
    %v154 = vsel %vm104, %v45, 0
    %v157 = vsel %vm104, %v46, 0
    %v160 = vsel %vm104, %v47, 0
    %v163 = vsel %vm104, %v48, 0
    %v166 = vsel %vm104, %v49, 0
    %v169 = vsel %vm104, %v50, 0
    %v172 = vsel %vm104, %v51, 0
    %v175 = vsel %vm104, %v52, 0
    %v178 = vsel %vm104, %v53, 0
    %v181 = vsel %vm104, %v54, 0
    %v184 = vsel %vm104, %v55, 0
    %v187 = vsel %vm104, %v56, 0
    %v190 = vsel %vm104, %v57, 0
    %v193 = vsel %vm104, %v58, 0
    %v196 = vsel %vm104, %v59, 0
    %v199 = vsel %vm104, %v60, 0
    %v202 = vsel %vm104, %v61, 0
    %v205 = vsel %vm104, %v62, 0
    %v208 = vsel %vm104, %v63, 0
    %v211 = vsel %vm104, %v64, 0
    %v214 = vsel %vm104, %v65, 0
    %v217 = vsel %vm104, %v66, 0
    %v220 = vsel %vm104, %v67, 0
    %v223 = vsel %vm104, %v68, 0
    %v226 = vsel %vm104, %v69, 0
    %v229 = vsel %vm104, %v70, 0
    %v232 = vsel %vm104, %v71, 0
    %v235 = vsel %vm104, %v72, 0
    %v238 = vsel %vm104, %v73, 0
    %v241 = vsel %vm104, %v74, 0
    %v244 = vsel %vm104, %v75, 0
    %v247 = vsel %vm104, %v76, 0
    %v250 = vsel %vm104, %v77, 0
    %v253 = vsel %vm104, %v78, 0
    %v256 = vsel %vm104, %v79, 0
    %v259 = vsel %vm104, %v80, 0
    %v262 = vsel %vm104, %v81, 0
    %v265 = vsel %vm104, %v82, 0
    %v268 = vsel %vm104, %v83, 0
    %v271 = vsel %vm104, %v84, 0
    %v274 = vsel %vm104, %v85, 0
    %v277 = vsel %vm104, %v86, 0
    %v280 = vsel %vm104, %v87, 0
    %v283 = vsel %vm104, %v88, 0
    %v286 = vsel %vm104, %v89, 0
    %v289 = vsel %vm104, %v90, 0
    %v292 = vsel %vm104, %v91, 0
    %v295 = vsel %vm104, %v92, 0
    %297 = vmatprep.subr.mxu0 0.0
    %298 = vmatpush1.msra.mxu0 0.0
    %299 = vmatprep.subr.mxu0 0.0
    %300 = vmatpush1.msra.mxu0 0.0
    %301 = vmatprep.subr.mxu0 0.0
    %302 = vmatpush1.msra.mxu0 0.0
    %303 = vmatprep.subr.mxu0 0.0
    %304 = vmatpush1.msra.mxu0 0.0
    %305 = vmatprep.subr.mxu0 0.0
    %306 = vmatpush1.msra.mxu0 0.0
    %307 = vmatprep.subr.mxu0 0.0
    %308 = vmatpush1.msra.mxu0 0.0
    %309 = vmatprep.subr.mxu0 0.0
    %310 = vmatpush1.msra.mxu0 0.0
    %311 = vmatprep.subr.mxu0 0.0
    %312 = vmatpush1.msra.mxu0 0.0
    %313 = vmatprep.subr.mxu0 0.0
    %314 = vmatpush1.msra.mxu0 0.0
    %315 = vmatprep.subr.mxu0 0.0
    %316 = vmatpush1.msra.mxu0 0.0
    %317 = vmatprep.subr.mxu0 0.0
    %318 = vmatpush1.msra.mxu0 0.0
    %319 = vmatprep.subr.mxu0 0.0
    %320 = vmatpush1.msra.mxu0 0.0
    %321 = vmatprep.subr.mxu0 0.0
    %322 = vmatpush1.msra.mxu0 %v96
    %323 = vmatprep.subr.mxu0 0.0
    %324 = vmatpush1.msra.mxu0 %v95
    %325 = vmatprep.subr.mxu0 0.0
    %326 = vmatpush1.msra.mxu0 %v94
    %327 = vmatprep.subr.mxu0 0.0
    %328 = vmatpush1.msra.mxu0 %v93
    %329 = vmatprep.subr.mxu0 0.0
    %330 = vmatpush2.msra.mxu0 0.0
    %331 = vmatprep.subr.mxu0 0.0
    %332 = vmatpush2.msra.mxu0 0.0
    %333 = vmatprep.subr.mxu0 0.0
    %334 = vmatpush2.msra.mxu0 0.0
    %335 = vmatprep.subr.mxu0 0.0
    %336 = vmatpush2.msra.mxu0 0.0
    %337 = vmatprep.subr.mxu0 0.0
    %338 = vmatpush2.msra.mxu0 0.0
    %339 = vmatprep.subr.mxu0 0.0
    %340 = vmatpush2.msra.mxu0 0.0
    %341 = vmatprep.subr.mxu0 0.0
    %342 = vmatpush2.msra.mxu0 0.0
    %343 = vmatprep.subr.mxu0 0.0
    %344 = vmatpush2.msra.mxu0 0.0
    %345 = vmatprep.subr.mxu0 0.0
    %346 = vmatpush2.msra.mxu0 0.0
    %347 = vmatprep.subr.mxu0 0.0
    %348 = vmatpush2.msra.mxu0 0.0
    %349 = vmatprep.subr.mxu0 0.0
    %350 = vmatpush2.msra.mxu0 0.0
    %351 = vmatprep.subr.mxu0 0.0
    %352 = vmatpush2.msra.mxu0 0.0
    %353 = vmatprep.subr.mxu0 0.0
    %354 = vmatpush2.msra.mxu0 0.0
    %355 = vmatprep.subr.mxu0 0.0
    %356 = vmatpush2.msra.mxu0 0.0
    %357 = vmatprep.subr.mxu0 0.0
    %358 = vmatpush2.msra.mxu0 0.0
    %359 = vmatprep.subr.mxu0 0.0
    %360 = vmatpush2.msra.mxu0 0.0
    %361 = vmatprep.mubr.f32.mxu0 0.0
    %362 = vmatmul.mubr.f32.gmra.mxu0 %v106
    %v363 = vpop.f32.mrf.mxu0
    %v364 = vadd.f32 %v102, %v363
    %v365 = vpop.f32.mrf.mxu0
    %366 = vmatprep.mubr.f32.mxu0 0.0
    %367 = vmatmul.mubr.f32.gmra.mxu0 %v109
    %v368 = vpop.f32.mrf.mxu0
    %v369 = vadd.f32 %v102, %v368
    %v370 = vpop.f32.mrf.mxu0
    %371 = vmatprep.mubr.f32.mxu0 0.0
    %372 = vmatmul.mubr.f32.gmra.mxu0 %v112
    %v373 = vpop.f32.mrf.mxu0
    %v374 = vadd.f32 %v102, %v373
    %v375 = vpop.f32.mrf.mxu0
    %376 = vmatprep.mubr.f32.mxu0 0.0
    %377 = vmatmul.mubr.f32.gmra.mxu0 %v115
    %v378 = vpop.f32.mrf.mxu0
    %v379 = vadd.f32 %v102, %v378
    %v380 = vpop.f32.mrf.mxu0
    %381 = vmatprep.mubr.f32.mxu0 0.0
    %382 = vmatmul.mubr.f32.gmra.mxu0 %v118
    %v383 = vpop.f32.mrf.mxu0
    %v384 = vadd.f32 %v102, %v383
    %v385 = vpop.f32.mrf.mxu0
    %386 = vmatprep.mubr.f32.mxu0 0.0
    %387 = vmatmul.mubr.f32.gmra.mxu0 %v121
    %v388 = vpop.f32.mrf.mxu0
    %v389 = vadd.f32 %v102, %v388
    %v390 = vpop.f32.mrf.mxu0
    %391 = vmatprep.mubr.f32.mxu0 0.0
    %392 = vmatmul.mubr.f32.gmra.mxu0 %v124
    %v393 = vpop.f32.mrf.mxu0
    %v394 = vadd.f32 %v102, %v393
    %v395 = vpop.f32.mrf.mxu0
    %396 = vmatprep.mubr.f32.mxu0 0.0
    %397 = vmatmul.mubr.f32.gmra.mxu0 %v127
    %v398 = vpop.f32.mrf.mxu0
    %v399 = vadd.f32 %v102, %v398
    %v400 = vpop.f32.mrf.mxu0
    %401 = vmatprep.mubr.f32.mxu0 0.0
    %402 = vmatmul.mubr.f32.gmra.mxu0 %v130
    %v403 = vpop.f32.mrf.mxu0
    %v404 = vadd.f32 %v102, %v403
    %v405 = vpop.f32.mrf.mxu0
    %406 = vmatprep.mubr.f32.mxu0 0.0
    %407 = vmatmul.mubr.f32.gmra.mxu0 %v133
    %v408 = vpop.f32.mrf.mxu0
    %v409 = vadd.f32 %v102, %v408
    %v410 = vpop.f32.mrf.mxu0
    %411 = vmatprep.mubr.f32.mxu0 0.0
    %412 = vmatmul.mubr.f32.gmra.mxu0 %v136
    %v413 = vpop.f32.mrf.mxu0
    %v414 = vadd.f32 %v102, %v413
    %v415 = vpop.f32.mrf.mxu0
    %416 = vmatprep.mubr.f32.mxu0 0.0
    %417 = vmatmul.mubr.f32.gmra.mxu0 %v139
    %v418 = vpop.f32.mrf.mxu0
    %v419 = vadd.f32 %v102, %v418
    %v420 = vpop.f32.mrf.mxu0
    %421 = vmatprep.mubr.f32.mxu0 0.0
    %422 = vmatmul.mubr.f32.gmra.mxu0 %v142
    %v423 = vpop.f32.mrf.mxu0
    %v424 = vadd.f32 %v102, %v423
    %v425 = vpop.f32.mrf.mxu0
    %426 = vmatprep.mubr.f32.mxu0 0.0
    %427 = vmatmul.mubr.f32.gmra.mxu0 %v145
    %v428 = vpop.f32.mrf.mxu0
    %v429 = vadd.f32 %v102, %v428
    %v430 = vpop.f32.mrf.mxu0
    %431 = vmatprep.mubr.f32.mxu0 0.0
    %432 = vmatmul.mubr.f32.gmra.mxu0 %v148
    %v433 = vpop.f32.mrf.mxu0
    %v434 = vadd.f32 %v102, %v433
    %v435 = vpop.f32.mrf.mxu0
    %436 = vmatprep.mubr.f32.mxu0 0.0
    %437 = vmatmul.mubr.f32.gmra.mxu0 %v151
    %v438 = vpop.f32.mrf.mxu0
    %v439 = vadd.f32 %v102, %v438
    %v440 = vpop.f32.mrf.mxu0
    %441 = vmatprep.mubr.f32.mxu0 0.0
    %442 = vmatmul.mubr.f32.gmra.mxu0 %v154
    %v443 = vpop.f32.mrf.mxu0
    %v444 = vadd.f32 %v102, %v443
    %v445 = vpop.f32.mrf.mxu0
    %446 = vmatprep.mubr.f32.mxu0 0.0
    %447 = vmatmul.mubr.f32.gmra.mxu0 %v157
    %v448 = vpop.f32.mrf.mxu0
    %v449 = vadd.f32 %v102, %v448
    %v450 = vpop.f32.mrf.mxu0
    %451 = vmatprep.mubr.f32.mxu0 0.0
    %452 = vmatmul.mubr.f32.gmra.mxu0 %v160
    %v453 = vpop.f32.mrf.mxu0
    %v454 = vadd.f32 %v102, %v453
    %v455 = vpop.f32.mrf.mxu0
    %456 = vmatprep.mubr.f32.mxu0 0.0
    %457 = vmatmul.mubr.f32.gmra.mxu0 %v163
    %v458 = vpop.f32.mrf.mxu0
    %v459 = vadd.f32 %v102, %v458
    %v460 = vpop.f32.mrf.mxu0
    %461 = vmatprep.mubr.f32.mxu0 0.0
    %462 = vmatmul.mubr.f32.gmra.mxu0 %v166
    %v463 = vpop.f32.mrf.mxu0
    %v464 = vadd.f32 %v102, %v463
    %v465 = vpop.f32.mrf.mxu0
    %466 = vmatprep.mubr.f32.mxu0 0.0
    %467 = vmatmul.mubr.f32.gmra.mxu0 %v169
    %v468 = vpop.f32.mrf.mxu0
    %v469 = vadd.f32 %v102, %v468
    %v470 = vpop.f32.mrf.mxu0
    %471 = vmatprep.mubr.f32.mxu0 0.0
    %472 = vmatmul.mubr.f32.gmra.mxu0 %v172
    %v473 = vpop.f32.mrf.mxu0
    %v474 = vadd.f32 %v102, %v473
    %v475 = vpop.f32.mrf.mxu0
    %476 = vmatprep.mubr.f32.mxu0 0.0
    %477 = vmatmul.mubr.f32.gmra.mxu0 %v175
    %v478 = vpop.f32.mrf.mxu0
    %v479 = vadd.f32 %v102, %v478
    %v480 = vpop.f32.mrf.mxu0
    %481 = vmatprep.mubr.f32.mxu0 0.0
    %482 = vmatmul.mubr.f32.gmra.mxu0 %v178
    %v483 = vpop.f32.mrf.mxu0
    %v484 = vadd.f32 %v102, %v483
    %v485 = vpop.f32.mrf.mxu0
    %486 = vmatprep.mubr.f32.mxu0 0.0
    %487 = vmatmul.mubr.f32.gmra.mxu0 %v181
    %v488 = vpop.f32.mrf.mxu0
    %v489 = vadd.f32 %v102, %v488
    %v490 = vpop.f32.mrf.mxu0
    %491 = vmatprep.mubr.f32.mxu0 0.0
    %492 = vmatmul.mubr.f32.gmra.mxu0 %v184
    %v493 = vpop.f32.mrf.mxu0
    %v494 = vadd.f32 %v102, %v493
    %v495 = vpop.f32.mrf.mxu0
    %496 = vmatprep.mubr.f32.mxu0 0.0
    %497 = vmatmul.mubr.f32.gmra.mxu0 %v187
    %v498 = vpop.f32.mrf.mxu0
    %v499 = vadd.f32 %v102, %v498
    %v500 = vpop.f32.mrf.mxu0
    %501 = vmatprep.mubr.f32.mxu0 0.0
    %502 = vmatmul.mubr.f32.gmra.mxu0 %v190
    %v503 = vpop.f32.mrf.mxu0
    %v504 = vadd.f32 %v102, %v503
    %v505 = vpop.f32.mrf.mxu0
    %506 = vmatprep.mubr.f32.mxu0 0.0
    %507 = vmatmul.mubr.f32.gmra.mxu0 %v193
    %v508 = vpop.f32.mrf.mxu0
    %v509 = vadd.f32 %v102, %v508
    %v510 = vpop.f32.mrf.mxu0
    %511 = vmatprep.mubr.f32.mxu0 0.0
    %512 = vmatmul.mubr.f32.gmra.mxu0 %v196
    %v513 = vpop.f32.mrf.mxu0
    %v514 = vadd.f32 %v102, %v513
    %v515 = vpop.f32.mrf.mxu0
    %516 = vmatprep.mubr.f32.mxu0 0.0
    %517 = vmatmul.mubr.f32.gmra.mxu0 %v199
    %v518 = vpop.f32.mrf.mxu0
    %v519 = vadd.f32 %v102, %v518
    %v520 = vpop.f32.mrf.mxu0
    %521 = vmatprep.mubr.f32.mxu0 0.0
    %522 = vmatmul.mubr.f32.gmra.mxu0 %v202
    %v523 = vpop.f32.mrf.mxu0
    %v524 = vadd.f32 %v102, %v523
    %v525 = vpop.f32.mrf.mxu0
    %526 = vmatprep.mubr.f32.mxu0 0.0
    %527 = vmatmul.mubr.f32.gmra.mxu0 %v205
    %v528 = vpop.f32.mrf.mxu0
    %v529 = vadd.f32 %v102, %v528
    %v530 = vpop.f32.mrf.mxu0
    %531 = vmatprep.mubr.f32.mxu0 0.0
    %532 = vmatmul.mubr.f32.gmra.mxu0 %v208
    %v533 = vpop.f32.mrf.mxu0
    %v534 = vadd.f32 %v102, %v533
    %v535 = vpop.f32.mrf.mxu0
    %536 = vmatprep.mubr.f32.mxu0 0.0
    %537 = vmatmul.mubr.f32.gmra.mxu0 %v211
    %v538 = vpop.f32.mrf.mxu0
    %v539 = vadd.f32 %v102, %v538
    %v540 = vpop.f32.mrf.mxu0
    %541 = vmatprep.mubr.f32.mxu0 0.0
    %542 = vmatmul.mubr.f32.gmra.mxu0 %v214
    %v543 = vpop.f32.mrf.mxu0
    %v544 = vadd.f32 %v102, %v543
    %v545 = vpop.f32.mrf.mxu0
    %546 = vmatprep.mubr.f32.mxu0 0.0
    %547 = vmatmul.mubr.f32.gmra.mxu0 %v217
    %v548 = vpop.f32.mrf.mxu0
    %v549 = vadd.f32 %v102, %v548
    %v550 = vpop.f32.mrf.mxu0
    %551 = vmatprep.mubr.f32.mxu0 0.0
    %552 = vmatmul.mubr.f32.gmra.mxu0 %v220
    %v553 = vpop.f32.mrf.mxu0
    %v554 = vadd.f32 %v102, %v553
    %v555 = vpop.f32.mrf.mxu0
    %556 = vmatprep.mubr.f32.mxu0 0.0
    %557 = vmatmul.mubr.f32.gmra.mxu0 %v223
    %v558 = vpop.f32.mrf.mxu0
    %v559 = vadd.f32 %v102, %v558
    %v560 = vpop.f32.mrf.mxu0
    %561 = vmatprep.mubr.f32.mxu0 0.0
    %562 = vmatmul.mubr.f32.gmra.mxu0 %v226
    %v563 = vpop.f32.mrf.mxu0
    %v564 = vadd.f32 %v102, %v563
    %v565 = vpop.f32.mrf.mxu0
    %566 = vmatprep.mubr.f32.mxu0 0.0
    %567 = vmatmul.mubr.f32.gmra.mxu0 %v229
    %v568 = vpop.f32.mrf.mxu0
    %v569 = vadd.f32 %v102, %v568
    %v570 = vpop.f32.mrf.mxu0
    %571 = vmatprep.mubr.f32.mxu0 0.0
    %572 = vmatmul.mubr.f32.gmra.mxu0 %v232
    %v573 = vpop.f32.mrf.mxu0
    %v574 = vadd.f32 %v102, %v573
    %v575 = vpop.f32.mrf.mxu0
    %576 = vmatprep.mubr.f32.mxu0 0.0
    %577 = vmatmul.mubr.f32.gmra.mxu0 %v235
    %v578 = vpop.f32.mrf.mxu0
    %v579 = vadd.f32 %v102, %v578
    %v580 = vpop.f32.mrf.mxu0
    %581 = vmatprep.mubr.f32.mxu0 0.0
    %582 = vmatmul.mubr.f32.gmra.mxu0 %v238
    %v583 = vpop.f32.mrf.mxu0
    %v584 = vadd.f32 %v102, %v583
    %v585 = vpop.f32.mrf.mxu0
    %586 = vmatprep.mubr.f32.mxu0 0.0
    %587 = vmatmul.mubr.f32.gmra.mxu0 %v241
    %v588 = vpop.f32.mrf.mxu0
    %v589 = vadd.f32 %v102, %v588
    %v590 = vpop.f32.mrf.mxu0
    %591 = vmatprep.mubr.f32.mxu0 0.0
    %592 = vmatmul.mubr.f32.gmra.mxu0 %v244
    %v593 = vpop.f32.mrf.mxu0
    %v594 = vadd.f32 %v102, %v593
    %v595 = vpop.f32.mrf.mxu0
    %596 = vmatprep.mubr.f32.mxu0 0.0
    %597 = vmatmul.mubr.f32.gmra.mxu0 %v247
    %v598 = vpop.f32.mrf.mxu0
    %v599 = vadd.f32 %v102, %v598
    %v600 = vpop.f32.mrf.mxu0
    %601 = vmatprep.mubr.f32.mxu0 0.0
    %602 = vmatmul.mubr.f32.gmra.mxu0 %v250
    %v603 = vpop.f32.mrf.mxu0
    %v604 = vadd.f32 %v102, %v603
    %v605 = vpop.f32.mrf.mxu0
    %606 = vmatprep.mubr.f32.mxu0 0.0
    %607 = vmatmul.mubr.f32.gmra.mxu0 %v253
    %v608 = vpop.f32.mrf.mxu0
    %v609 = vadd.f32 %v102, %v608
    %v610 = vpop.f32.mrf.mxu0
    %611 = vmatprep.mubr.f32.mxu0 0.0
    %612 = vmatmul.mubr.f32.gmra.mxu0 %v256
    %v613 = vpop.f32.mrf.mxu0
    %v614 = vadd.f32 %v102, %v613
    %v615 = vpop.f32.mrf.mxu0
    %616 = vmatprep.mubr.f32.mxu0 0.0
    %617 = vmatmul.mubr.f32.gmra.mxu0 %v259
    %v618 = vpop.f32.mrf.mxu0
    %v619 = vadd.f32 %v102, %v618
    %v620 = vpop.f32.mrf.mxu0
    %621 = vmatprep.mubr.f32.mxu0 0.0
    %622 = vmatmul.mubr.f32.gmra.mxu0 %v262
    %v623 = vpop.f32.mrf.mxu0
    %v624 = vadd.f32 %v102, %v623
    %v625 = vpop.f32.mrf.mxu0
    %626 = vmatprep.mubr.f32.mxu0 0.0
    %627 = vmatmul.mubr.f32.gmra.mxu0 %v265
    %v628 = vpop.f32.mrf.mxu0
    %v629 = vadd.f32 %v102, %v628
    %v630 = vpop.f32.mrf.mxu0
    %631 = vmatprep.mubr.f32.mxu0 0.0
    %632 = vmatmul.mubr.f32.gmra.mxu0 %v268
    %v633 = vpop.f32.mrf.mxu0
    %v634 = vadd.f32 %v102, %v633
    %v635 = vpop.f32.mrf.mxu0
    %636 = vmatprep.mubr.f32.mxu0 0.0
    %637 = vmatmul.mubr.f32.gmra.mxu0 %v271
    %v638 = vpop.f32.mrf.mxu0
    %v639 = vadd.f32 %v102, %v638
    %v640 = vpop.f32.mrf.mxu0
    %641 = vmatprep.mubr.f32.mxu0 0.0
    %642 = vmatmul.mubr.f32.gmra.mxu0 %v274
    %v643 = vpop.f32.mrf.mxu0
    %v644 = vadd.f32 %v102, %v643
    %v645 = vpop.f32.mrf.mxu0
    %646 = vmatprep.mubr.f32.mxu0 0.0
    %647 = vmatmul.mubr.f32.gmra.mxu0 %v277
    %v648 = vpop.f32.mrf.mxu0
    %v649 = vadd.f32 %v102, %v648
    %v650 = vpop.f32.mrf.mxu0
    %651 = vmatprep.mubr.f32.mxu0 0.0
    %652 = vmatmul.mubr.f32.gmra.mxu0 %v280
    %v653 = vpop.f32.mrf.mxu0
    %v654 = vadd.f32 %v102, %v653
    %v655 = vpop.f32.mrf.mxu0
    %656 = vmatprep.mubr.f32.mxu0 0.0
    %657 = vmatmul.mubr.f32.gmra.mxu0 %v283
    %v658 = vpop.f32.mrf.mxu0
    %v659 = vadd.f32 %v102, %v658
    %v660 = vpop.f32.mrf.mxu0
    %661 = vmatprep.mubr.f32.mxu0 0.0
    %662 = vmatmul.mubr.f32.gmra.mxu0 %v286
    %v663 = vpop.f32.mrf.mxu0
    %v664 = vadd.f32 %v102, %v663
    %v665 = vpop.f32.mrf.mxu0
    %666 = vmatprep.mubr.f32.mxu0 0.0
    %667 = vmatmul.mubr.f32.gmra.mxu0 %v289
    %v668 = vpop.f32.mrf.mxu0
    %v669 = vadd.f32 %v102, %v668
    %v670 = vpop.f32.mrf.mxu0
    %671 = vmatprep.mubr.f32.mxu0 0.0
    %672 = vmatmul.mubr.f32.gmra.mxu0 %v292
    %v673 = vpop.f32.mrf.mxu0
    %v674 = vadd.f32 %v102, %v673
    %v675 = vpop.f32.mrf.mxu0
    %676 = vmatprep.mubr.f32.mxu0 0.0
    %677 = vmatmul.mubr.f32.gmra.mxu0 %v295
    %v678 = vpop.f32.mrf.mxu0
    %v679 = vadd.f32 %v102, %v678
    %v680 = vpop.f32.mrf.mxu0
    %681 = vdwg.mxu0
    %v682 = vmax.f32 %v364, 0.0
    %v683 = vmax.f32 %v369, 0.0
    %v684 = vmax.f32 %v374, 0.0
    %v685 = vmax.f32 %v379, 0.0
    %v686 = vmax.f32 %v384, 0.0
    %v687 = vmax.f32 %v389, 0.0
    %v688 = vmax.f32 %v394, 0.0
    %v689 = vmax.f32 %v399, 0.0
    %v690 = vmax.f32 %v404, 0.0
    %v691 = vmax.f32 %v409, 0.0
    %v692 = vmax.f32 %v414, 0.0
    %v693 = vmax.f32 %v419, 0.0
    %v694 = vmax.f32 %v424, 0.0
    %v695 = vmax.f32 %v429, 0.0
    %v696 = vmax.f32 %v434, 0.0
    %v697 = vmax.f32 %v439, 0.0
    %v698 = vmax.f32 %v444, 0.0
    %v699 = vmax.f32 %v449, 0.0
    %v700 = vmax.f32 %v454, 0.0
    %v701 = vmax.f32 %v459, 0.0
    %v702 = vmax.f32 %v464, 0.0
    %v703 = vmax.f32 %v469, 0.0
    %v704 = vmax.f32 %v474, 0.0
    %v705 = vmax.f32 %v479, 0.0
    %v706 = vmax.f32 %v484, 0.0
    %v707 = vmax.f32 %v489, 0.0
    %v708 = vmax.f32 %v494, 0.0
    %v709 = vmax.f32 %v499, 0.0
    %v710 = vmax.f32 %v504, 0.0
    %v711 = vmax.f32 %v509, 0.0
    %v712 = vmax.f32 %v514, 0.0
    %v713 = vmax.f32 %v519, 0.0
    %v714 = vmax.f32 %v524, 0.0
    %v715 = vmax.f32 %v529, 0.0
    %v716 = vmax.f32 %v534, 0.0
    %v717 = vmax.f32 %v539, 0.0
    %v718 = vmax.f32 %v544, 0.0
    %v719 = vmax.f32 %v549, 0.0
    %v720 = vmax.f32 %v554, 0.0
    %v721 = vmax.f32 %v559, 0.0
    %v722 = vmax.f32 %v564, 0.0
    %v723 = vmax.f32 %v569, 0.0
    %v724 = vmax.f32 %v574, 0.0
    %v725 = vmax.f32 %v579, 0.0
    %v726 = vmax.f32 %v584, 0.0
    %v727 = vmax.f32 %v589, 0.0
    %v728 = vmax.f32 %v594, 0.0
    %v729 = vmax.f32 %v599, 0.0
    %v730 = vmax.f32 %v604, 0.0
    %v731 = vmax.f32 %v609, 0.0
    %v732 = vmax.f32 %v614, 0.0
    %v733 = vmax.f32 %v619, 0.0
    %v734 = vmax.f32 %v624, 0.0
    %v735 = vmax.f32 %v629, 0.0
    %v736 = vmax.f32 %v634, 0.0
    %v737 = vmax.f32 %v639, 0.0
    %v738 = vmax.f32 %v644, 0.0
    %v739 = vmax.f32 %v649, 0.0
    %v740 = vmax.f32 %v654, 0.0
    %v741 = vmax.f32 %v659, 0.0
    %v742 = vmax.f32 %v664, 0.0
    %v743 = vmax.f32 %v669, 0.0
    %v744 = vmax.f32 %v674, 0.0
    %v745 = vmax.f32 %v679, 0.0
    %v746 = vld [vmem:[%s3] sm:$0xff]
    %v747 = vld [vmem:[%s3 + $0x8] sm:$0xff]
    %v748 = vld [vmem:[%s3 + $0x10] sm:$0xff]
    %v749 = vld [vmem:[%s3 + $0x18] sm:$0xff]
    %v750 = vld [vmem:[%s3 + $0x20] sm:$0xff]
    %v751 = vld [vmem:[%s3 + $0x28] sm:$0xff]
    %v752 = vld [vmem:[%s3 + $0x30] sm:$0xff]
    %v753 = vld [vmem:[%s3 + $0x38] sm:$0xff]
    %v754 = vld [vmem:[%s4] sm:$0x1]
    %v756 = vlaneseq
    %v757 = vshrl.u32 %v756, 7
    %v758 = vsub.s32 0, %v757
    %v759 = vrot.slane %v754, %v758
    %vm761 = vcmask 523264
    %v763 = vsel %vm761, %v682, 0
    %v766 = vsel %vm761, %v683, 0
    %v769 = vsel %vm761, %v684, 0
    %v772 = vsel %vm761, %v685, 0
    %v775 = vsel %vm761, %v686, 0
    %v778 = vsel %vm761, %v687, 0
    %v781 = vsel %vm761, %v688, 0
    %v784 = vsel %vm761, %v689, 0
    %v787 = vsel %vm761, %v690, 0
    %v790 = vsel %vm761, %v691, 0
    %v793 = vsel %vm761, %v692, 0
    %v796 = vsel %vm761, %v693, 0
    %v799 = vsel %vm761, %v694, 0
    %v802 = vsel %vm761, %v695, 0
    %v805 = vsel %vm761, %v696, 0
    %v808 = vsel %vm761, %v697, 0
    %v811 = vsel %vm761, %v698, 0
    %v814 = vsel %vm761, %v699, 0
    %v817 = vsel %vm761, %v700, 0
    %v820 = vsel %vm761, %v701, 0
    %v823 = vsel %vm761, %v702, 0
    %v826 = vsel %vm761, %v703, 0
    %v829 = vsel %vm761, %v704, 0
    %v832 = vsel %vm761, %v705, 0
    %v835 = vsel %vm761, %v706, 0
    %v838 = vsel %vm761, %v707, 0
    %v841 = vsel %vm761, %v708, 0
    %v844 = vsel %vm761, %v709, 0
    %v847 = vsel %vm761, %v710, 0
    %v850 = vsel %vm761, %v711, 0
    %v853 = vsel %vm761, %v712, 0
    %v856 = vsel %vm761, %v713, 0
    %v859 = vsel %vm761, %v714, 0
    %v862 = vsel %vm761, %v715, 0
    %v865 = vsel %vm761, %v716, 0
    %v868 = vsel %vm761, %v717, 0
    %v871 = vsel %vm761, %v718, 0
    %v874 = vsel %vm761, %v719, 0
    %v877 = vsel %vm761, %v720, 0
    %v880 = vsel %vm761, %v721, 0
    %v883 = vsel %vm761, %v722, 0
    %v886 = vsel %vm761, %v723, 0
    %v889 = vsel %vm761, %v724, 0
    %v892 = vsel %vm761, %v725, 0
    %v895 = vsel %vm761, %v726, 0
    %v898 = vsel %vm761, %v727, 0
    %v901 = vsel %vm761, %v728, 0
    %v904 = vsel %vm761, %v729, 0
    %v907 = vsel %vm761, %v730, 0
    %v910 = vsel %vm761, %v731, 0
    %v913 = vsel %vm761, %v732, 0
    %v916 = vsel %vm761, %v733, 0
    %v919 = vsel %vm761, %v734, 0
    %v922 = vsel %vm761, %v735, 0
    %v925 = vsel %vm761, %v736, 0
    %v928 = vsel %vm761, %v737, 0
    %v931 = vsel %vm761, %v738, 0
    %v934 = vsel %vm761, %v739, 0
    %v937 = vsel %vm761, %v740, 0
    %v940 = vsel %vm761, %v741, 0
    %v943 = vsel %vm761, %v742, 0
    %v946 = vsel %vm761, %v743, 0
    %v949 = vsel %vm761, %v744, 0
    %v952 = vsel %vm761, %v745, 0
    %954 = vmatprep.subr.mxu0 0.0
    %955 = vmatpush1.msra.mxu0 0.0
    %956 = vmatprep.subr.mxu0 0.0
    %957 = vmatpush1.msra.mxu0 0.0
    %958 = vmatprep.subr.mxu0 0.0
    %959 = vmatpush1.msra.mxu0 0.0
    %960 = vmatprep.subr.mxu0 0.0
    %961 = vmatpush1.msra.mxu0 0.0
    %962 = vmatprep.subr.mxu0 0.0
    %963 = vmatpush1.msra.mxu0 0.0
    %964 = vmatprep.subr.mxu0 0.0
    %965 = vmatpush1.msra.mxu0 0.0
    %966 = vmatprep.subr.mxu0 0.0
    %967 = vmatpush1.msra.mxu0 0.0
    %968 = vmatprep.subr.mxu0 0.0
    %969 = vmatpush1.msra.mxu0 0.0
    %970 = vmatprep.subr.mxu0 0.0
    %971 = vmatpush1.msra.mxu0 %v753
    %972 = vmatprep.subr.mxu0 0.0
    %973 = vmatpush1.msra.mxu0 %v752
    %974 = vmatprep.subr.mxu0 0.0
    %975 = vmatpush1.msra.mxu0 %v751
    %976 = vmatprep.subr.mxu0 0.0
    %977 = vmatpush1.msra.mxu0 %v750
    %978 = vmatprep.subr.mxu0 0.0
    %979 = vmatpush1.msra.mxu0 %v749
    %980 = vmatprep.subr.mxu0 0.0
    %981 = vmatpush1.msra.mxu0 %v748
    %982 = vmatprep.subr.mxu0 0.0
    %983 = vmatpush1.msra.mxu0 %v747
    %984 = vmatprep.subr.mxu0 0.0
    %985 = vmatpush1.msra.mxu0 %v746
    %986 = vmatprep.subr.mxu0 0.0
    %987 = vmatpush2.msra.mxu0 0.0
    %988 = vmatprep.subr.mxu0 0.0
    %989 = vmatpush2.msra.mxu0 0.0
    %990 = vmatprep.subr.mxu0 0.0
    %991 = vmatpush2.msra.mxu0 0.0
    %992 = vmatprep.subr.mxu0 0.0
    %993 = vmatpush2.msra.mxu0 0.0
    %994 = vmatprep.subr.mxu0 0.0
    %995 = vmatpush2.msra.mxu0 0.0
    %996 = vmatprep.subr.mxu0 0.0
    %997 = vmatpush2.msra.mxu0 0.0
    %998 = vmatprep.subr.mxu0 0.0
    %999 = vmatpush2.msra.mxu0 0.0
    %1000 = vmatprep.subr.mxu0 0.0
    %1001 = vmatpush2.msra.mxu0 0.0
    %1002 = vmatprep.subr.mxu0 0.0
    %1003 = vmatpush2.msra.mxu0 0.0
    %1004 = vmatprep.subr.mxu0 0.0
    %1005 = vmatpush2.msra.mxu0 0.0
    %1006 = vmatprep.subr.mxu0 0.0
    %1007 = vmatpush2.msra.mxu0 0.0
    %1008 = vmatprep.subr.mxu0 0.0
    %1009 = vmatpush2.msra.mxu0 0.0
    %1010 = vmatprep.subr.mxu0 0.0
    %1011 = vmatpush2.msra.mxu0 0.0
    %1012 = vmatprep.subr.mxu0 0.0
    %1013 = vmatpush2.msra.mxu0 0.0
    %1014 = vmatprep.subr.mxu0 0.0
    %1015 = vmatpush2.msra.mxu0 0.0
    %1016 = vmatprep.subr.mxu0 0.0
    %1017 = vmatpush2.msra.mxu0 0.0
    %1018 = vmatprep.mubr.f32.mxu0 0.0
    %1019 = vmatmul.mubr.f32.gmra.mxu0 %v763
    %v1020 = vpop.f32.mrf.mxu0
    %v1021 = vadd.f32 %v759, %v1020
    %v1022 = vpop.f32.mrf.mxu0
    %1023 = vmatprep.mubr.f32.mxu0 0.0
    %1024 = vmatmul.mubr.f32.gmra.mxu0 %v766
    %v1025 = vpop.f32.mrf.mxu0
    %v1026 = vadd.f32 %v759, %v1025
    %v1027 = vpop.f32.mrf.mxu0
    %1028 = vmatprep.mubr.f32.mxu0 0.0
    %1029 = vmatmul.mubr.f32.gmra.mxu0 %v769
    %v1030 = vpop.f32.mrf.mxu0
    %v1031 = vadd.f32 %v759, %v1030
    %v1032 = vpop.f32.mrf.mxu0
    %1033 = vmatprep.mubr.f32.mxu0 0.0
    %1034 = vmatmul.mubr.f32.gmra.mxu0 %v772
    %v1035 = vpop.f32.mrf.mxu0
    %v1036 = vadd.f32 %v759, %v1035
    %v1037 = vpop.f32.mrf.mxu0
    %1038 = vmatprep.mubr.f32.mxu0 0.0
    %1039 = vmatmul.mubr.f32.gmra.mxu0 %v775
    %v1040 = vpop.f32.mrf.mxu0
    %v1041 = vadd.f32 %v759, %v1040
    %v1042 = vpop.f32.mrf.mxu0
    %1043 = vmatprep.mubr.f32.mxu0 0.0
    %1044 = vmatmul.mubr.f32.gmra.mxu0 %v778
    %v1045 = vpop.f32.mrf.mxu0
    %v1046 = vadd.f32 %v759, %v1045
    %v1047 = vpop.f32.mrf.mxu0
    %1048 = vmatprep.mubr.f32.mxu0 0.0
    %1049 = vmatmul.mubr.f32.gmra.mxu0 %v781
    %v1050 = vpop.f32.mrf.mxu0
    %v1051 = vadd.f32 %v759, %v1050
    %v1052 = vpop.f32.mrf.mxu0
    %1053 = vmatprep.mubr.f32.mxu0 0.0
    %1054 = vmatmul.mubr.f32.gmra.mxu0 %v784
    %v1055 = vpop.f32.mrf.mxu0
    %v1056 = vadd.f32 %v759, %v1055
    %v1057 = vpop.f32.mrf.mxu0
    %1058 = vmatprep.mubr.f32.mxu0 0.0
    %1059 = vmatmul.mubr.f32.gmra.mxu0 %v787
    %v1060 = vpop.f32.mrf.mxu0
    %v1061 = vadd.f32 %v759, %v1060
    %v1062 = vpop.f32.mrf.mxu0
    %1063 = vmatprep.mubr.f32.mxu0 0.0
    %1064 = vmatmul.mubr.f32.gmra.mxu0 %v790
    %v1065 = vpop.f32.mrf.mxu0
    %v1066 = vadd.f32 %v759, %v1065
    %v1067 = vpop.f32.mrf.mxu0
    %1068 = vmatprep.mubr.f32.mxu0 0.0
    %1069 = vmatmul.mubr.f32.gmra.mxu0 %v793
    %v1070 = vpop.f32.mrf.mxu0
    %v1071 = vadd.f32 %v759, %v1070
    %v1072 = vpop.f32.mrf.mxu0
    %1073 = vmatprep.mubr.f32.mxu0 0.0
    %1074 = vmatmul.mubr.f32.gmra.mxu0 %v796
    %v1075 = vpop.f32.mrf.mxu0
    %v1076 = vadd.f32 %v759, %v1075
    %v1077 = vpop.f32.mrf.mxu0
    %1078 = vmatprep.mubr.f32.mxu0 0.0
    %1079 = vmatmul.mubr.f32.gmra.mxu0 %v799
    %v1080 = vpop.f32.mrf.mxu0
    %v1081 = vadd.f32 %v759, %v1080
    %v1082 = vpop.f32.mrf.mxu0
    %1083 = vmatprep.mubr.f32.mxu0 0.0
    %1084 = vmatmul.mubr.f32.gmra.mxu0 %v802
    %v1085 = vpop.f32.mrf.mxu0
    %v1086 = vadd.f32 %v759, %v1085
    %v1087 = vpop.f32.mrf.mxu0
    %1088 = vmatprep.mubr.f32.mxu0 0.0
    %1089 = vmatmul.mubr.f32.gmra.mxu0 %v805
    %v1090 = vpop.f32.mrf.mxu0
    %v1091 = vadd.f32 %v759, %v1090
    %v1092 = vpop.f32.mrf.mxu0
    %1093 = vmatprep.mubr.f32.mxu0 0.0
    %1094 = vmatmul.mubr.f32.gmra.mxu0 %v808
    %v1095 = vpop.f32.mrf.mxu0
    %v1096 = vadd.f32 %v759, %v1095
    %v1097 = vpop.f32.mrf.mxu0
    %1098 = vmatprep.mubr.f32.mxu0 0.0
    %1099 = vmatmul.mubr.f32.gmra.mxu0 %v811
    %v1100 = vpop.f32.mrf.mxu0
    %v1101 = vadd.f32 %v759, %v1100
    %v1102 = vpop.f32.mrf.mxu0
    %1103 = vmatprep.mubr.f32.mxu0 0.0
    %1104 = vmatmul.mubr.f32.gmra.mxu0 %v814
    %v1105 = vpop.f32.mrf.mxu0
    %v1106 = vadd.f32 %v759, %v1105
    %v1107 = vpop.f32.mrf.mxu0
    %1108 = vmatprep.mubr.f32.mxu0 0.0
    %1109 = vmatmul.mubr.f32.gmra.mxu0 %v817
    %v1110 = vpop.f32.mrf.mxu0
    %v1111 = vadd.f32 %v759, %v1110
    %v1112 = vpop.f32.mrf.mxu0
    %1113 = vmatprep.mubr.f32.mxu0 0.0
    %1114 = vmatmul.mubr.f32.gmra.mxu0 %v820
    %v1115 = vpop.f32.mrf.mxu0
    %v1116 = vadd.f32 %v759, %v1115
    %v1117 = vpop.f32.mrf.mxu0
    %1118 = vmatprep.mubr.f32.mxu0 0.0
    %1119 = vmatmul.mubr.f32.gmra.mxu0 %v823
    %v1120 = vpop.f32.mrf.mxu0
    %v1121 = vadd.f32 %v759, %v1120
    %v1122 = vpop.f32.mrf.mxu0
    %1123 = vmatprep.mubr.f32.mxu0 0.0
    %1124 = vmatmul.mubr.f32.gmra.mxu0 %v826
    %v1125 = vpop.f32.mrf.mxu0
    %v1126 = vadd.f32 %v759, %v1125
    %v1127 = vpop.f32.mrf.mxu0
    %1128 = vmatprep.mubr.f32.mxu0 0.0
    %1129 = vmatmul.mubr.f32.gmra.mxu0 %v829
    %v1130 = vpop.f32.mrf.mxu0
    %v1131 = vadd.f32 %v759, %v1130
    %v1132 = vpop.f32.mrf.mxu0
    %1133 = vmatprep.mubr.f32.mxu0 0.0
    %1134 = vmatmul.mubr.f32.gmra.mxu0 %v832
    %v1135 = vpop.f32.mrf.mxu0
    %v1136 = vadd.f32 %v759, %v1135
    %v1137 = vpop.f32.mrf.mxu0
    %1138 = vmatprep.mubr.f32.mxu0 0.0
    %1139 = vmatmul.mubr.f32.gmra.mxu0 %v835
    %v1140 = vpop.f32.mrf.mxu0
    %v1141 = vadd.f32 %v759, %v1140
    %v1142 = vpop.f32.mrf.mxu0
    %1143 = vmatprep.mubr.f32.mxu0 0.0
    %1144 = vmatmul.mubr.f32.gmra.mxu0 %v838
    %v1145 = vpop.f32.mrf.mxu0
    %v1146 = vadd.f32 %v759, %v1145
    %v1147 = vpop.f32.mrf.mxu0
    %1148 = vmatprep.mubr.f32.mxu0 0.0
    %1149 = vmatmul.mubr.f32.gmra.mxu0 %v841
    %v1150 = vpop.f32.mrf.mxu0
    %v1151 = vadd.f32 %v759, %v1150
    %v1152 = vpop.f32.mrf.mxu0
    %1153 = vmatprep.mubr.f32.mxu0 0.0
    %1154 = vmatmul.mubr.f32.gmra.mxu0 %v844
    %v1155 = vpop.f32.mrf.mxu0
    %v1156 = vadd.f32 %v759, %v1155
    %v1157 = vpop.f32.mrf.mxu0
    %1158 = vmatprep.mubr.f32.mxu0 0.0
    %1159 = vmatmul.mubr.f32.gmra.mxu0 %v847
    %v1160 = vpop.f32.mrf.mxu0
    %v1161 = vadd.f32 %v759, %v1160
    %v1162 = vpop.f32.mrf.mxu0
    %1163 = vmatprep.mubr.f32.mxu0 0.0
    %1164 = vmatmul.mubr.f32.gmra.mxu0 %v850
    %v1165 = vpop.f32.mrf.mxu0
    %v1166 = vadd.f32 %v759, %v1165
    %v1167 = vpop.f32.mrf.mxu0
    %1168 = vmatprep.mubr.f32.mxu0 0.0
    %1169 = vmatmul.mubr.f32.gmra.mxu0 %v853
    %v1170 = vpop.f32.mrf.mxu0
    %v1171 = vadd.f32 %v759, %v1170
    %v1172 = vpop.f32.mrf.mxu0
    %1173 = vmatprep.mubr.f32.mxu0 0.0
    %1174 = vmatmul.mubr.f32.gmra.mxu0 %v856
    %v1175 = vpop.f32.mrf.mxu0
    %v1176 = vadd.f32 %v759, %v1175
    %v1177 = vpop.f32.mrf.mxu0
    %1178 = vmatprep.mubr.f32.mxu0 0.0
    %1179 = vmatmul.mubr.f32.gmra.mxu0 %v859
    %v1180 = vpop.f32.mrf.mxu0
    %v1181 = vadd.f32 %v759, %v1180
    %v1182 = vpop.f32.mrf.mxu0
    %1183 = vmatprep.mubr.f32.mxu0 0.0
    %1184 = vmatmul.mubr.f32.gmra.mxu0 %v862
    %v1185 = vpop.f32.mrf.mxu0
    %v1186 = vadd.f32 %v759, %v1185
    %v1187 = vpop.f32.mrf.mxu0
    %1188 = vmatprep.mubr.f32.mxu0 0.0
    %1189 = vmatmul.mubr.f32.gmra.mxu0 %v865
    %v1190 = vpop.f32.mrf.mxu0
    %v1191 = vadd.f32 %v759, %v1190
    %v1192 = vpop.f32.mrf.mxu0
    %1193 = vmatprep.mubr.f32.mxu0 0.0
    %1194 = vmatmul.mubr.f32.gmra.mxu0 %v868
    %v1195 = vpop.f32.mrf.mxu0
    %v1196 = vadd.f32 %v759, %v1195
    %v1197 = vpop.f32.mrf.mxu0
    %1198 = vmatprep.mubr.f32.mxu0 0.0
    %1199 = vmatmul.mubr.f32.gmra.mxu0 %v871
    %v1200 = vpop.f32.mrf.mxu0
    %v1201 = vadd.f32 %v759, %v1200
    %v1202 = vpop.f32.mrf.mxu0
    %1203 = vmatprep.mubr.f32.mxu0 0.0
    %1204 = vmatmul.mubr.f32.gmra.mxu0 %v874
    %v1205 = vpop.f32.mrf.mxu0
    %v1206 = vadd.f32 %v759, %v1205
    %v1207 = vpop.f32.mrf.mxu0
    %1208 = vmatprep.mubr.f32.mxu0 0.0
    %1209 = vmatmul.mubr.f32.gmra.mxu0 %v877
    %v1210 = vpop.f32.mrf.mxu0
    %v1211 = vadd.f32 %v759, %v1210
    %v1212 = vpop.f32.mrf.mxu0
    %1213 = vmatprep.mubr.f32.mxu0 0.0
    %1214 = vmatmul.mubr.f32.gmra.mxu0 %v880
    %v1215 = vpop.f32.mrf.mxu0
    %v1216 = vadd.f32 %v759, %v1215
    %v1217 = vpop.f32.mrf.mxu0
    %1218 = vmatprep.mubr.f32.mxu0 0.0
    %1219 = vmatmul.mubr.f32.gmra.mxu0 %v883
    %v1220 = vpop.f32.mrf.mxu0
    %v1221 = vadd.f32 %v759, %v1220
    %v1222 = vpop.f32.mrf.mxu0
    %1223 = vmatprep.mubr.f32.mxu0 0.0
    %1224 = vmatmul.mubr.f32.gmra.mxu0 %v886
    %v1225 = vpop.f32.mrf.mxu0
    %v1226 = vadd.f32 %v759, %v1225
    %v1227 = vpop.f32.mrf.mxu0
    %1228 = vmatprep.mubr.f32.mxu0 0.0
    %1229 = vmatmul.mubr.f32.gmra.mxu0 %v889
    %v1230 = vpop.f32.mrf.mxu0
    %v1231 = vadd.f32 %v759, %v1230
    %v1232 = vpop.f32.mrf.mxu0
    %1233 = vmatprep.mubr.f32.mxu0 0.0
    %1234 = vmatmul.mubr.f32.gmra.mxu0 %v892
    %v1235 = vpop.f32.mrf.mxu0
    %v1236 = vadd.f32 %v759, %v1235
    %v1237 = vpop.f32.mrf.mxu0
    %1238 = vmatprep.mubr.f32.mxu0 0.0
    %1239 = vmatmul.mubr.f32.gmra.mxu0 %v895
    %v1240 = vpop.f32.mrf.mxu0
    %v1241 = vadd.f32 %v759, %v1240
    %v1242 = vpop.f32.mrf.mxu0
    %1243 = vmatprep.mubr.f32.mxu0 0.0
    %1244 = vmatmul.mubr.f32.gmra.mxu0 %v898
    %v1245 = vpop.f32.mrf.mxu0
    %v1246 = vadd.f32 %v759, %v1245
    %v1247 = vpop.f32.mrf.mxu0
    %1248 = vmatprep.mubr.f32.mxu0 0.0
    %1249 = vmatmul.mubr.f32.gmra.mxu0 %v901
    %v1250 = vpop.f32.mrf.mxu0
    %v1251 = vadd.f32 %v759, %v1250
    %v1252 = vpop.f32.mrf.mxu0
    %1253 = vmatprep.mubr.f32.mxu0 0.0
    %1254 = vmatmul.mubr.f32.gmra.mxu0 %v904
    %v1255 = vpop.f32.mrf.mxu0
    %v1256 = vadd.f32 %v759, %v1255
    %v1257 = vpop.f32.mrf.mxu0
    %1258 = vmatprep.mubr.f32.mxu0 0.0
    %1259 = vmatmul.mubr.f32.gmra.mxu0 %v907
    %v1260 = vpop.f32.mrf.mxu0
    %v1261 = vadd.f32 %v759, %v1260
    %v1262 = vpop.f32.mrf.mxu0
    %1263 = vmatprep.mubr.f32.mxu0 0.0
    %1264 = vmatmul.mubr.f32.gmra.mxu0 %v910
    %v1265 = vpop.f32.mrf.mxu0
    %v1266 = vadd.f32 %v759, %v1265
    %v1267 = vpop.f32.mrf.mxu0
    %1268 = vmatprep.mubr.f32.mxu0 0.0
    %1269 = vmatmul.mubr.f32.gmra.mxu0 %v913
    %v1270 = vpop.f32.mrf.mxu0
    %v1271 = vadd.f32 %v759, %v1270
    %v1272 = vpop.f32.mrf.mxu0
    %1273 = vmatprep.mubr.f32.mxu0 0.0
    %1274 = vmatmul.mubr.f32.gmra.mxu0 %v916
    %v1275 = vpop.f32.mrf.mxu0
    %v1276 = vadd.f32 %v759, %v1275
    %v1277 = vpop.f32.mrf.mxu0
    %1278 = vmatprep.mubr.f32.mxu0 0.0
    %1279 = vmatmul.mubr.f32.gmra.mxu0 %v919
    %v1280 = vpop.f32.mrf.mxu0
    %v1281 = vadd.f32 %v759, %v1280
    %v1282 = vpop.f32.mrf.mxu0
    %1283 = vmatprep.mubr.f32.mxu0 0.0
    %1284 = vmatmul.mubr.f32.gmra.mxu0 %v922
    %v1285 = vpop.f32.mrf.mxu0
    %v1286 = vadd.f32 %v759, %v1285
    %v1287 = vpop.f32.mrf.mxu0
    %1288 = vmatprep.mubr.f32.mxu0 0.0
    %1289 = vmatmul.mubr.f32.gmra.mxu0 %v925
    %v1290 = vpop.f32.mrf.mxu0
    %v1291 = vadd.f32 %v759, %v1290
    %v1292 = vpop.f32.mrf.mxu0
    %1293 = vmatprep.mubr.f32.mxu0 0.0
    %1294 = vmatmul.mubr.f32.gmra.mxu0 %v928
    %v1295 = vpop.f32.mrf.mxu0
    %v1296 = vadd.f32 %v759, %v1295
    %v1297 = vpop.f32.mrf.mxu0
    %1298 = vmatprep.mubr.f32.mxu0 0.0
    %1299 = vmatmul.mubr.f32.gmra.mxu0 %v931
    %v1300 = vpop.f32.mrf.mxu0
    %v1301 = vadd.f32 %v759, %v1300
    %v1302 = vpop.f32.mrf.mxu0
    %1303 = vmatprep.mubr.f32.mxu0 0.0
    %1304 = vmatmul.mubr.f32.gmra.mxu0 %v934
    %v1305 = vpop.f32.mrf.mxu0
    %v1306 = vadd.f32 %v759, %v1305
    %v1307 = vpop.f32.mrf.mxu0
    %1308 = vmatprep.mubr.f32.mxu0 0.0
    %1309 = vmatmul.mubr.f32.gmra.mxu0 %v937
    %v1310 = vpop.f32.mrf.mxu0
    %v1311 = vadd.f32 %v759, %v1310
    %v1312 = vpop.f32.mrf.mxu0
    %1313 = vmatprep.mubr.f32.mxu0 0.0
    %1314 = vmatmul.mubr.f32.gmra.mxu0 %v940
    %v1315 = vpop.f32.mrf.mxu0
    %v1316 = vadd.f32 %v759, %v1315
    %v1317 = vpop.f32.mrf.mxu0
    %1318 = vmatprep.mubr.f32.mxu0 0.0
    %1319 = vmatmul.mubr.f32.gmra.mxu0 %v943
    %v1320 = vpop.f32.mrf.mxu0
    %v1321 = vadd.f32 %v759, %v1320
    %v1322 = vpop.f32.mrf.mxu0
    %1323 = vmatprep.mubr.f32.mxu0 0.0
    %1324 = vmatmul.mubr.f32.gmra.mxu0 %v946
    %v1325 = vpop.f32.mrf.mxu0
    %v1326 = vadd.f32 %v759, %v1325
    %v1327 = vpop.f32.mrf.mxu0
    %1328 = vmatprep.mubr.f32.mxu0 0.0
    %1329 = vmatmul.mubr.f32.gmra.mxu0 %v949
    %v1330 = vpop.f32.mrf.mxu0
    %v1331 = vadd.f32 %v759, %v1330
    %v1332 = vpop.f32.mrf.mxu0
    %1333 = vmatprep.mubr.f32.mxu0 0.0
    %1334 = vmatmul.mubr.f32.gmra.mxu0 %v952
    %v1335 = vpop.f32.mrf.mxu0
    %v1336 = vadd.f32 %v759, %v1335
    %v1337 = vpop.f32.mrf.mxu0
    %1338 = vdwg.mxu0
    %v1339 = vmax.f32 %v1021, 0.0
    %v1340 = vmax.f32 %v1026, 0.0
    %v1341 = vmax.f32 %v1031, 0.0
    %v1342 = vmax.f32 %v1036, 0.0
    %v1343 = vmax.f32 %v1041, 0.0
    %v1344 = vmax.f32 %v1046, 0.0
    %v1345 = vmax.f32 %v1051, 0.0
    %v1346 = vmax.f32 %v1056, 0.0
    %v1347 = vmax.f32 %v1061, 0.0
    %v1348 = vmax.f32 %v1066, 0.0
    %v1349 = vmax.f32 %v1071, 0.0
    %v1350 = vmax.f32 %v1076, 0.0
    %v1351 = vmax.f32 %v1081, 0.0
    %v1352 = vmax.f32 %v1086, 0.0
    %v1353 = vmax.f32 %v1091, 0.0
    %v1354 = vmax.f32 %v1096, 0.0
    %v1355 = vmax.f32 %v1101, 0.0
    %v1356 = vmax.f32 %v1106, 0.0
    %v1357 = vmax.f32 %v1111, 0.0
    %v1358 = vmax.f32 %v1116, 0.0
    %v1359 = vmax.f32 %v1121, 0.0
    %v1360 = vmax.f32 %v1126, 0.0
    %v1361 = vmax.f32 %v1131, 0.0
    %v1362 = vmax.f32 %v1136, 0.0
    %v1363 = vmax.f32 %v1141, 0.0
    %v1364 = vmax.f32 %v1146, 0.0
    %v1365 = vmax.f32 %v1151, 0.0
    %v1366 = vmax.f32 %v1156, 0.0
    %v1367 = vmax.f32 %v1161, 0.0
    %v1368 = vmax.f32 %v1166, 0.0
    %v1369 = vmax.f32 %v1171, 0.0
    %v1370 = vmax.f32 %v1176, 0.0
    %v1371 = vmax.f32 %v1181, 0.0
    %v1372 = vmax.f32 %v1186, 0.0
    %v1373 = vmax.f32 %v1191, 0.0
    %v1374 = vmax.f32 %v1196, 0.0
    %v1375 = vmax.f32 %v1201, 0.0
    %v1376 = vmax.f32 %v1206, 0.0
    %v1377 = vmax.f32 %v1211, 0.0
    %v1378 = vmax.f32 %v1216, 0.0
    %v1379 = vmax.f32 %v1221, 0.0
    %v1380 = vmax.f32 %v1226, 0.0
    %v1381 = vmax.f32 %v1231, 0.0
    %v1382 = vmax.f32 %v1236, 0.0
    %v1383 = vmax.f32 %v1241, 0.0
    %v1384 = vmax.f32 %v1246, 0.0
    %v1385 = vmax.f32 %v1251, 0.0
    %v1386 = vmax.f32 %v1256, 0.0
    %v1387 = vmax.f32 %v1261, 0.0
    %v1388 = vmax.f32 %v1266, 0.0
    %v1389 = vmax.f32 %v1271, 0.0
    %v1390 = vmax.f32 %v1276, 0.0
    %v1391 = vmax.f32 %v1281, 0.0
    %v1392 = vmax.f32 %v1286, 0.0
    %v1393 = vmax.f32 %v1291, 0.0
    %v1394 = vmax.f32 %v1296, 0.0
    %v1395 = vmax.f32 %v1301, 0.0
    %v1396 = vmax.f32 %v1306, 0.0
    %v1397 = vmax.f32 %v1311, 0.0
    %v1398 = vmax.f32 %v1316, 0.0
    %v1399 = vmax.f32 %v1321, 0.0
    %v1400 = vmax.f32 %v1326, 0.0
    %v1401 = vmax.f32 %v1331, 0.0
    %v1402 = vmax.f32 %v1336, 0.0
    %v1403 = vld [vmem:[%s5] sm:$0x1]
    %v1404 = vld [vmem:[#allocation2] sm:$0x1]
    %1406 = vset.pattern.permute.xlu0 0
    %1407 = vperm.xlu0 %1406, %v1404
    %v1408 = vpop.permute.xlu0 %1407
    %v1410 = vlaneseq
    %v1411 = vshrl.u32 %v1410, 7
    %v1412 = vsub.s32 0, %v1411
    %v1413 = vrot.slane %v1408, %v1412
    %v1415 = vsel %vm104, %v1403, 0
    %v1418 = vsel %vm104, %v1339, 0
    %v1421 = vsel %vm104, %v1340, 0
    %v1424 = vsel %vm104, %v1341, 0
    %v1427 = vsel %vm104, %v1342, 0
    %v1430 = vsel %vm104, %v1343, 0
    %v1433 = vsel %vm104, %v1344, 0
    %v1436 = vsel %vm104, %v1345, 0
    %v1439 = vsel %vm104, %v1346, 0
    %v1442 = vsel %vm104, %v1347, 0
    %v1445 = vsel %vm104, %v1348, 0
    %v1448 = vsel %vm104, %v1349, 0
    %v1451 = vsel %vm104, %v1350, 0
    %v1454 = vsel %vm104, %v1351, 0
    %v1457 = vsel %vm104, %v1352, 0
    %v1460 = vsel %vm104, %v1353, 0
    %v1463 = vsel %vm104, %v1354, 0
    %v1466 = vsel %vm104, %v1355, 0
    %v1469 = vsel %vm104, %v1356, 0
    %v1472 = vsel %vm104, %v1357, 0
    %v1475 = vsel %vm104, %v1358, 0
    %v1478 = vsel %vm104, %v1359, 0
    %v1481 = vsel %vm104, %v1360, 0
    %v1484 = vsel %vm104, %v1361, 0
    %v1487 = vsel %vm104, %v1362, 0
    %v1490 = vsel %vm104, %v1363, 0
    %v1493 = vsel %vm104, %v1364, 0
    %v1496 = vsel %vm104, %v1365, 0
    %v1499 = vsel %vm104, %v1366, 0
    %v1502 = vsel %vm104, %v1367, 0
    %v1505 = vsel %vm104, %v1368, 0
    %v1508 = vsel %vm104, %v1369, 0
    %v1511 = vsel %vm104, %v1370, 0
    %v1514 = vsel %vm104, %v1371, 0
    %v1517 = vsel %vm104, %v1372, 0
    %v1520 = vsel %vm104, %v1373, 0
    %v1523 = vsel %vm104, %v1374, 0
    %v1526 = vsel %vm104, %v1375, 0
    %v1529 = vsel %vm104, %v1376, 0
    %v1532 = vsel %vm104, %v1377, 0
    %v1535 = vsel %vm104, %v1378, 0
    %v1538 = vsel %vm104, %v1379, 0
    %v1541 = vsel %vm104, %v1380, 0
    %v1544 = vsel %vm104, %v1381, 0
    %v1547 = vsel %vm104, %v1382, 0
    %v1550 = vsel %vm104, %v1383, 0
    %v1553 = vsel %vm104, %v1384, 0
    %v1556 = vsel %vm104, %v1385, 0
    %v1559 = vsel %vm104, %v1386, 0
    %v1562 = vsel %vm104, %v1387, 0
    %v1565 = vsel %vm104, %v1388, 0
    %v1568 = vsel %vm104, %v1389, 0
    %v1571 = vsel %vm104, %v1390, 0
    %v1574 = vsel %vm104, %v1391, 0
    %v1577 = vsel %vm104, %v1392, 0
    %v1580 = vsel %vm104, %v1393, 0
    %v1583 = vsel %vm104, %v1394, 0
    %v1586 = vsel %vm104, %v1395, 0
    %v1589 = vsel %vm104, %v1396, 0
    %v1592 = vsel %vm104, %v1397, 0
    %v1595 = vsel %vm104, %v1398, 0
    %v1598 = vsel %vm104, %v1399, 0
    %v1601 = vsel %vm104, %v1400, 0
    %v1604 = vsel %vm104, %v1401, 0
    %v1607 = vsel %vm104, %v1402, 0
    %1609 = vmatprep.subr.mxu0 0.0
    %1610 = vmatpush1.xpose.msra.mxu0 %v1463
    %1611 = vmatprep.subr.mxu0 0.0
    %1612 = vmatpush1.xpose.msra.mxu0 %v1460
    %1613 = vmatprep.subr.mxu0 0.0
    %1614 = vmatpush1.xpose.msra.mxu0 %v1457
    %1615 = vmatprep.subr.mxu0 0.0
    %1616 = vmatpush1.xpose.msra.mxu0 %v1454
    %1617 = vmatprep.subr.mxu0 0.0
    %1618 = vmatpush1.xpose.msra.mxu0 %v1451
    %1619 = vmatprep.subr.mxu0 0.0
    %1620 = vmatpush1.xpose.msra.mxu0 %v1448
    %1621 = vmatprep.subr.mxu0 0.0
    %1622 = vmatpush1.xpose.msra.mxu0 %v1445
    %1623 = vmatprep.subr.mxu0 0.0
    %1624 = vmatpush1.xpose.msra.mxu0 %v1442
    %1625 = vmatprep.subr.mxu0 0.0
    %1626 = vmatpush1.xpose.msra.mxu0 %v1439
    %1627 = vmatprep.subr.mxu0 0.0
    %1628 = vmatpush1.xpose.msra.mxu0 %v1436
    %1629 = vmatprep.subr.mxu0 0.0
    %1630 = vmatpush1.xpose.msra.mxu0 %v1433
    %1631 = vmatprep.subr.mxu0 0.0
    %1632 = vmatpush1.xpose.msra.mxu0 %v1430
    %1633 = vmatprep.subr.mxu0 0.0
    %1634 = vmatpush1.xpose.msra.mxu0 %v1427
    %1635 = vmatprep.subr.mxu0 0.0
    %1636 = vmatpush1.xpose.msra.mxu0 %v1424
    %1637 = vmatprep.subr.mxu0 0.0
    %1638 = vmatpush1.xpose.msra.mxu0 %v1421
    %1639 = vmatprep.subr.mxu0 0.0
    %1640 = vmatpush1.xpose.msra.mxu0 %v1418
    %1641 = vmatprep.subr.mxu0 0.0
    %1642 = vmatpush2.xpose.msra.mxu0 %v1511
    %1643 = vmatprep.subr.mxu0 0.0
    %1644 = vmatpush2.xpose.msra.mxu0 %v1508
    %1645 = vmatprep.subr.mxu0 0.0
    %1646 = vmatpush2.xpose.msra.mxu0 %v1505
    %1647 = vmatprep.subr.mxu0 0.0
    %1648 = vmatpush2.xpose.msra.mxu0 %v1502
    %1649 = vmatprep.subr.mxu0 0.0
    %1650 = vmatpush2.xpose.msra.mxu0 %v1499
    %1651 = vmatprep.subr.mxu0 0.0
    %1652 = vmatpush2.xpose.msra.mxu0 %v1496
    %1653 = vmatprep.subr.mxu0 0.0
    %1654 = vmatpush2.xpose.msra.mxu0 %v1493
    %1655 = vmatprep.subr.mxu0 0.0
    %1656 = vmatpush2.xpose.msra.mxu0 %v1490
    %1657 = vmatprep.subr.mxu0 0.0
    %1658 = vmatpush2.xpose.msra.mxu0 %v1487
    %1659 = vmatprep.subr.mxu0 0.0
    %1660 = vmatpush2.xpose.msra.mxu0 %v1484
    %1661 = vmatprep.subr.mxu0 0.0
    %1662 = vmatpush2.xpose.msra.mxu0 %v1481
    %1663 = vmatprep.subr.mxu0 0.0
    %1664 = vmatpush2.xpose.msra.mxu0 %v1478
    %1665 = vmatprep.subr.mxu0 0.0
    %1666 = vmatpush2.xpose.msra.mxu0 %v1475
    %1667 = vmatprep.subr.mxu0 0.0
    %1668 = vmatpush2.xpose.msra.mxu0 %v1472
    %1669 = vmatprep.subr.mxu0 0.0
    %1670 = vmatpush2.xpose.msra.mxu0 %v1469
    %1671 = vmatprep.subr.mxu0 0.0
    %1672 = vmatpush2.xpose.msra.mxu0 %v1466
    %1673 = vmatprep.mubr.f32.mxu0 0.0
    %1674 = vmatmul.mubr.f32.gmra.mxu0 %v1415
    %v1675 = vpop.f32.mrf.mxu0
    %v1676 = vadd.f32 %v1413, %v1675
    %v1677 = vpop.f32.mrf.mxu0
    %v1678 = vadd.f32 %v1413, %v1677
    %1679 = vdwg.mxu0
    %1680 = vmatprep.subr.mxu0 0.0
    %1681 = vmatpush1.xpose.msra.mxu0 %v1559
    %1682 = vmatprep.subr.mxu0 0.0
    %1683 = vmatpush1.xpose.msra.mxu0 %v1556
    %1684 = vmatprep.subr.mxu0 0.0
    %1685 = vmatpush1.xpose.msra.mxu0 %v1553
    %1686 = vmatprep.subr.mxu0 0.0
    %1687 = vmatpush1.xpose.msra.mxu0 %v1550
    %1688 = vmatprep.subr.mxu0 0.0
    %1689 = vmatpush1.xpose.msra.mxu0 %v1547
    %1690 = vmatprep.subr.mxu0 0.0
    %1691 = vmatpush1.xpose.msra.mxu0 %v1544
    %1692 = vmatprep.subr.mxu0 0.0
    %1693 = vmatpush1.xpose.msra.mxu0 %v1541
    %1694 = vmatprep.subr.mxu0 0.0
    %1695 = vmatpush1.xpose.msra.mxu0 %v1538
    %1696 = vmatprep.subr.mxu0 0.0
    %1697 = vmatpush1.xpose.msra.mxu0 %v1535
    %1698 = vmatprep.subr.mxu0 0.0
    %1699 = vmatpush1.xpose.msra.mxu0 %v1532
    %1700 = vmatprep.subr.mxu0 0.0
    %1701 = vmatpush1.xpose.msra.mxu0 %v1529
    %1702 = vmatprep.subr.mxu0 0.0
    %1703 = vmatpush1.xpose.msra.mxu0 %v1526
    %1704 = vmatprep.subr.mxu0 0.0
    %1705 = vmatpush1.xpose.msra.mxu0 %v1523
    %1706 = vmatprep.subr.mxu0 0.0
    %1707 = vmatpush1.xpose.msra.mxu0 %v1520
    %1708 = vmatprep.subr.mxu0 0.0
    %1709 = vmatpush1.xpose.msra.mxu0 %v1517
    %1710 = vmatprep.subr.mxu0 0.0
    %1711 = vmatpush1.xpose.msra.mxu0 %v1514
    %1712 = vmatprep.subr.mxu0 0.0
    %1713 = vmatpush2.xpose.msra.mxu0 %v1607
    %1714 = vmatprep.subr.mxu0 0.0
    %1715 = vmatpush2.xpose.msra.mxu0 %v1604
    %1716 = vmatprep.subr.mxu0 0.0
    %1717 = vmatpush2.xpose.msra.mxu0 %v1601
    %1718 = vmatprep.subr.mxu0 0.0
    %1719 = vmatpush2.xpose.msra.mxu0 %v1598
    %1720 = vmatprep.subr.mxu0 0.0
    %1721 = vmatpush2.xpose.msra.mxu0 %v1595
    %1722 = vmatprep.subr.mxu0 0.0
    %1723 = vmatpush2.xpose.msra.mxu0 %v1592
    %1724 = vmatprep.subr.mxu0 0.0
    %1725 = vmatpush2.xpose.msra.mxu0 %v1589
    %1726 = vmatprep.subr.mxu0 0.0
    %1727 = vmatpush2.xpose.msra.mxu0 %v1586
    %1728 = vmatprep.subr.mxu0 0.0
    %1729 = vmatpush2.xpose.msra.mxu0 %v1583
    %1730 = vmatprep.subr.mxu0 0.0
    %1731 = vmatpush2.xpose.msra.mxu0 %v1580
    %1732 = vmatprep.subr.mxu0 0.0
    %1733 = vmatpush2.xpose.msra.mxu0 %v1577
    %1734 = vmatprep.subr.mxu0 0.0
    %1735 = vmatpush2.xpose.msra.mxu0 %v1574
    %1736 = vmatprep.subr.mxu0 0.0
    %1737 = vmatpush2.xpose.msra.mxu0 %v1571
    %1738 = vmatprep.subr.mxu0 0.0
    %1739 = vmatpush2.xpose.msra.mxu0 %v1568
    %1740 = vmatprep.subr.mxu0 0.0
    %1741 = vmatpush2.xpose.msra.mxu0 %v1565
    %1742 = vmatprep.subr.mxu0 0.0
    %1743 = vmatpush2.xpose.msra.mxu0 %v1562
    %1744 = vmatprep.mubr.f32.mxu0 0.0
    %1745 = vmatmul.mubr.f32.gmra.mxu0 %v1415
    %v1746 = vpop.f32.mrf.mxu0
    %v1747 = vadd.f32 %v1413, %v1746
    %v1748 = vpop.f32.mrf.mxu0
    %v1749 = vadd.f32 %v1413, %v1748
    %1750 = vdwg.mxu0
    %v1751 = vxor.u32 %v1676, 2147483648
    %v1752 = vxor.u32 %v1678, 2147483648
    %v1753 = vxor.u32 %v1747, 2147483648
    %v1754 = vxor.u32 %v1749, 2147483648
    %v1755 = vmul.f32 %v1751, 1.442695
    %v1756 = vpow.pop %v1755
    %v1757 = vmul.f32 %v1752, 1.442695
    %v1758 = vpow.pop %v1757
    %v1759 = vmul.f32 %v1753, 1.442695
    %v1760 = vpow.pop %v1759
    %v1761 = vmul.f32 %v1754, 1.442695
    %v1762 = vpow.pop %v1761
    %v1763 = vadd.f32 %v1756, 1.0
    %v1764 = vadd.f32 %v1758, 1.0
    %v1765 = vadd.f32 %v1760, 1.0
    %v1766 = vadd.f32 %v1762, 1.0
    %v1767 = vrcp.pop %v1763
    %v1768 = vmul.f32 1.0, %v1767
    %v1769 = vrcp.pop %v1764
    %v1770 = vmul.f32 1.0, %v1769
    %v1771 = vrcp.pop %v1765
    %v1772 = vmul.f32 1.0, %v1771
    %v1773 = vrcp.pop %v1766
    %v1774 = vmul.f32 1.0, %v1773
    %v1779 = vcombine.low %v1768, %v1770
    %v1780 = vcombine.low %v1772, %v1774
    %v1782 = vunpack.c.l.s4 1966171168
    %v1783 = vunpack.c.0.s8 %v1782
    %v1784 = vlaneseq
    %v1785 = vshrl.u32 %v1784, 7
    %v1786 = vsub.s32 %v1783, %v1785
    %v1787 = vrot.slane %v1779, %v1786
    %v1789 = vunpack.c.l.s4 1966171168
    %v1790 = vunpack.c.0.s8 %v1789
    %v1791 = vlaneseq
    %v1792 = vshrl.u32 %v1791, 7
    %v1793 = vsub.s32 %v1790, %v1792
    %v1794 = vrot.slane %v1780, %v1793
    %v1795 = vcombine.low %v1787, %v1794
    %v1797 = vunpack.c.l.s4 1966171168
    %v1798 = vunpack.c.0.s8 %v1797
    %v1799 = vlaneseq
    %v1800 = vshrl.u32 %v1799, 7
    %v1801 = vsub.s32 %v1798, %v1800
    %v1802 = vrot.slane %v1795, %v1801
    %v1804 = vlaneseq
    %vm1805 = vcmp.ge.s32.totalorder %v1804, 0
    %vm1806 = vcmp.lt.s32.totalorder %v1804, 512
    %vm1807 = vmand %vm1805, %vm1806
    %1808 = vst.msk [vmem:[#allocation3] sm:$0xf] %vm1807, %v1802
    // Predicated region
    $region30: #{tpu_custom_call.1} parent=1 // pred_check
      _
    $region31: #{tpu_custom_call.1} parent=1 // pred_check_branch
      %1810 = sbr.rel (0) target = $region33
    $region32: #{tpu_custom_call.1} parent=1 // pred_region
      %s1812 = ssub.s32 64, 64
      %1813 = vsyncadd [#allocation4], %s1812
      %s1815 = sshll.u32 [#allocation3], 4
      %s1816 = int_to_ptr.vmem [resolvable:$true] %s1815
      %1818 = dma.vmem_to_hbm [thread:$0]  %s1816, 64, %s7, [#allocation4]
    $region33: #{tpu_custom_call.1} parent=1 // pred_fallthru
      _
    // Predicated region
    $region34: #{tpu_custom_call.1} parent=1 // pred_check
      _
    $region35: #{tpu_custom_call.1} parent=1 // pred_check_branch
      %1820 = sbr.rel (0) target = $region37
    $region36: #{tpu_custom_call.1} parent=1 // pred_region
      %1821 = dma.done [#allocation4], 64
    $region37: #{tpu_custom_call.1} parent=1 // pred_fallthru
      _
    %1822 = vsyncpa [#allocation4], 1

</llo_original>
